<compile_context>
chip_gen: v5e
topology: v5e:2x2
jax: 0.10.0
libtpu: 0.0.40
codegen_flags: <defaults>
</compile_context>

<pallas_src>
import functools

import jax
import jax.numpy as jnp
from jax import lax
from jax.experimental import pallas as pl
from jax.experimental.pallas import tpu as pltpu

EPS = 1e-5
LANE = 128


def _bn_fold(h, gamma, beta):
    """Training-mode BatchNorm over rows (= N*H*W) per channel, biased variance,
    folded into a single `h * scale + bias` apply (one sum/sumsq pass)."""
    inv_n = 1.0 / h.shape[0]
    mean = jnp.sum(h, axis=0, keepdims=True) * inv_n
    var = jnp.sum(h * h, axis=0, keepdims=True) * inv_n - mean * mean
    scale = gamma * lax.rsqrt(var + EPS)
    return h * scale + (beta - mean * scale)


def block_kernel(x2_ref, w1t_ref, g1_ref, be1_ref,
                 w2t_ref, g2_ref, be2_ref,
                 w3t_ref, g3_ref, be3_ref,
                 wf1t_ref, bf1_ref, wf2t_ref, bf2_ref,
                 wsct_ref, bsc_ref,
                 o_ref, hpad_ref, *, N, H, W):
    """Fully fused Block forward on lane-dense (rows, 128-padded-channel) operands."""
    HW = H * W
    Cin = w1t_ref.shape[1]      # padded
    Cout = w3t_ref.shape[1]     # padded

    x2 = x2_ref[...]            # (N*HW, Cex_p) bf16

    # --- conv1 (1x1 == matmul) + BN1 (batch stats) + ReLU ------------------------
    h1 = jnp.dot(x2, w1t_ref[...], preferred_element_type=jnp.float32)
    h1 = jnp.maximum(_bn_fold(h1, g1_ref[...], be1_ref[...]), 0.0)

    # --- in-kernel spatial zero-pad: write interior of a padded NHWC scratch -----
    hpad_ref[...] = jnp.zeros_like(hpad_ref)
    hpad_ref[:, 1:H + 1, 1:W + 1, :] = h1.reshape(N, H, W, Cin)

    # --- conv2 (3x3, pad=1) as a single im2col matmul, K = 9*Cin -----------------
    cols = [hpad_ref[:, ky:ky + H, kx:kx + W, :]
            .reshape(N * HW, Cin).astype(jnp.bfloat16)
            for ky in range(3) for kx in range(3)]
    im2col = jnp.concatenate(cols, axis=-1)                       # (N*HW, 9*Cin)
    h2 = jnp.dot(im2col, w2t_ref[...], preferred_element_type=jnp.float32)
    h2 = jnp.maximum(_bn_fold(h2, g2_ref[...], be2_ref[...]), 0.0)

    # --- conv3 (1x1) + BN3 (no ReLU) ----------------------------------------------
    h3 = jnp.dot(h2.astype(jnp.bfloat16), w3t_ref[...],
                 preferred_element_type=jnp.float32)
    h3 = _bn_fold(h3, g3_ref[...], be3_ref[...])                  # (N*HW, Cout) f32
    h3_3 = h3.reshape(N, HW, Cout)

    # --- SE: global avg pool -> fc1 -> ReLU -> fc2 -> sigmoid -> channel scale ----
    pooled = jnp.mean(h3_3, axis=1)                               # (N, Cout)
    s = jnp.dot(pooled.astype(jnp.bfloat16), wf1t_ref[...],
                preferred_element_type=jnp.float32) + bf1_ref[...]
    s = jnp.maximum(s, 0.0)
    s = jnp.dot(s.astype(jnp.bfloat16), wf2t_ref[...],
                preferred_element_type=jnp.float32) + bf2_ref[...]
    s = jax.nn.sigmoid(s)                                         # (N, Cout)

    # --- projection shortcut (1x1 conv) + residual add + ReLU ---------------------
    sc = jnp.dot(x2, wsct_ref[...], preferred_element_type=jnp.float32) + bsc_ref[...]
    o_ref[...] = jnp.maximum(h3_3 * s[:, None, :] + sc.reshape(N, HW, Cout), 0.0)


def _rup(n, m=LANE):
    return ((n + m - 1) // m) * m


def _pad2(a, rows, cols):
    return jnp.pad(a, ((0, rows - a.shape[0]), (0, cols - a.shape[1])))


def _pad_row(v, cols):
    return jnp.pad(v[None, :], ((0, 0), (0, cols - v.shape[0])))


def block_forward(x_nchw, p):
    """Pallas forward of Block.  x_nchw: (N, Cex, H, W) f32 -> (N, Cout, H, W) f32."""
    N, Cex, H, W = x_nchw.shape
    Cin = p['w1'].shape[0]
    Cout = p['w3'].shape[0]
    Cr = p['wf1'].shape[0]

    Cexp, Cinp, Coutp, Crp = _rup(Cex), _rup(Cin), _rup(Cout), _rup(Cr)
    NHW = N * H * W
    f32, bf16 = jnp.float32, jnp.bfloat16

    # NCHW -> (rows, channel) lane-dense layout; channels zero-padded to 128.
    x2 = jnp.transpose(x_nchw, (0, 2, 3, 1)).reshape(NHW, Cex)
    x2 = _pad2(x2, NHW, Cexp).astype(bf16)

    # conv / fc weights as (K, N) matmul operands, zero-padded + bf16.
    w1t = _pad2(p['w1'].reshape(Cin, Cex).T, Cexp, Cinp).astype(bf16)
    w2t = jnp.concatenate(
        [_pad2(p['w2'][:, :, ky, kx].T, Cinp, Cinp)
         for ky in range(3) for kx in range(3)], axis=0).astype(bf16)   # (9*Cinp, Cinp)
    w3t = _pad2(p['w3'].reshape(Cout, Cin).T, Cinp, Coutp).astype(bf16)
    wsct = _pad2(p['wsc'].reshape(Cout, Cex).T, Cexp, Coutp).astype(bf16)
    wf1t = _pad2(p['wf1'].T, Coutp, Crp).astype(bf16)
    wf2t = _pad2(p['wf2'].T, Crp, Coutp).astype(bf16)

    # BN affine params + the biases NOT followed by a BN (bsc, bf1, bf2).
    # Conv biases b1/b2/b3 are dropped: cancelled exactly by batch-stat BN.
    g1, be1 = _pad_row(p['g1'], Cinp), _pad_row(p['be1'], Cinp)
    g2, be2 = _pad_row(p['g2'], Cinp), _pad_row(p['be2'], Cinp)
    g3, be3 = _pad_row(p['g3'], Coutp), _pad_row(p['be3'], Coutp)
    bf1 = _pad_row(p['bf1'], Crp)
    bf2 = _pad_row(p['bf2'], Coutp)
    bsc = _pad_row(p['bsc'], Coutp)

    vmem = functools.partial(pl.BlockSpec, memory_space=pltpu.MemorySpace.VMEM)
    kernel = functools.partial(block_kernel, N=N, H=H, W=W)

    y = pl.pallas_call(
        kernel,
        out_shape=jax.ShapeDtypeStruct((N, H * W, Coutp), f32),
        in_specs=[vmem()] * 16,
        out_specs=vmem(),
        scratch_shapes=[pltpu.VMEM((N, H + 2, W + 2, Cinp), f32)],
        compiler_params=pltpu.CompilerParams(vmem_limit_bytes=48 * 1024 * 1024),
    )(x2, w1t, g1, be1,
      w2t, g2, be2,
      w3t, g3, be3,
      wf1t, bf1, wf2t, bf2,
      wsct, bsc)

    y = y[:, :, :Cout].reshape(N, H, W, Cout)
    return jnp.transpose(y, (0, 3, 1, 2))


def reference_forward(x, p):
    """Pure-JAX NCHW reference (mirrors the PyTorch forward) for correctness check."""
    hp = lax.Precision.HIGHEST

    def conv(x, w, b, pad):
        y = lax.conv_general_dilated(x, w, (1, 1), [(pad, pad), (pad, pad)],
                                     dimension_numbers=('NCHW', 'OIHW', 'NCHW'),
                                     precision=hp)
        return y + b[None, :, None, None]

    def bn(x, g, be):
        mean = jnp.mean(x, axis=(0, 2, 3), keepdims=True)
        var = jnp.mean((x - mean) ** 2, axis=(0, 2, 3), keepdims=True)
        return ((x - mean) * lax.rsqrt(var + EPS)
                * g[None, :, None, None] + be[None, :, None, None])

    h = jax.nn.relu(bn(conv(x, p['w1'], p['b1'], 0), p['g1'], p['be1']))
    h = jax.nn.relu(bn(conv(h, p['w2'], p['b2'], 1), p['g2'], p['be2']))
    h = bn(conv(h, p['w3'], p['b3'], 0), p['g3'], p['be3'])
    s = jnp.mean(h, axis=(2, 3))
    s = jax.nn.relu(jnp.dot(s, p['wf1'].T, precision=hp) + p['bf1'])
    s = jax.nn.sigmoid(jnp.dot(s, p['wf2'].T, precision=hp) + p['bf2'])
    h = h * s[:, :, None, None]
    sc = conv(x, p['wsc'], p['bsc'], 0)
    return jax.nn.relu(h + sc)


def init_params(key, channel_in, channel_out, channel_ex_in):
    Cr = channel_out // 16
    ks = jax.random.split(key, 10)
    n = lambda k, shp, s=0.1: (s * jax.random.normal(k, shp)).astype(jnp.float32)
    ones = lambda c: jnp.ones((c,), jnp.float32)
    zeros = lambda c: jnp.zeros((c,), jnp.float32)
    return {
        # conv1: 1x1, Cex -> Cin
        'w1': n(ks[0], (channel_in, channel_ex_in, 1, 1)), 'b1': n(ks[1], (channel_in,)),
        'g1': ones(channel_in), 'be1': zeros(channel_in),
        # conv2: 3x3, Cin -> Cin
        'w2': n(ks[2], (channel_in, channel_in, 3, 3)), 'b2': n(ks[3], (channel_in,)),
        'g2': ones(channel_in), 'be2': zeros(channel_in),
        # conv3: 1x1, Cin -> Cout
        'w3': n(ks[4], (channel_out, channel_in, 1, 1)), 'b3': n(ks[5], (channel_out,)),
        'g3': ones(channel_out), 'be3': zeros(channel_out),
        # SE fc layers
        'wf1': n(ks[6], (Cr, channel_out)), 'bf1': zeros(Cr),
        'wf2': n(ks[7], (channel_out, Cr)), 'bf2': zeros(channel_out),
        # projection shortcut (channel_ex_in != channel_out)
        'wsc': n(ks[8], (channel_out, channel_ex_in, 1, 1)), 'bsc': n(ks[9], (channel_out,)),
    }


if __name__ == "__main__":
    N, Cex, Cin, Cout, H, W = 2, 16, 32, 32, 8, 8
    key = jax.random.PRNGKey(0)
    kx, kp = jax.random.split(key)
    x = jax.random.normal(kx, (N, Cex, H, W), jnp.float32)
    params = init_params(kp, Cin, Cout, Cex)

    y = jax.block_until_ready(block_forward(x, params))
    y_ref = jax.block_until_ready(reference_forward(x, params))

    assert y.shape == (N, Cout, H, W), y.shape
    assert bool(jnp.all(jnp.isfinite(y)))
    assert jnp.allclose(y, y_ref, rtol=2e-2, atol=2e-2), (
        float(jnp.max(jnp.abs(y - y_ref))))
    print("KERNEL_OK")
</pallas_src>

<mosaic_0001>
module attributes {stable_mosaic.version = 11 : i64} {
  func.func @block_kernel(%arg0: memref<128x128xbf16, #tpu.memory_space<vmem>>, %arg1: memref<128x128xbf16, #tpu.memory_space<vmem>>, %arg2: memref<1x128xf32, #tpu.memory_space<vmem>>, %arg3: memref<1x128xf32, #tpu.memory_space<vmem>>, %arg4: memref<1152x128xbf16, #tpu.memory_space<vmem>>, %arg5: memref<1x128xf32, #tpu.memory_space<vmem>>, %arg6: memref<1x128xf32, #tpu.memory_space<vmem>>, %arg7: memref<128x128xbf16, #tpu.memory_space<vmem>>, %arg8: memref<1x128xf32, #tpu.memory_space<vmem>>, %arg9: memref<1x128xf32, #tpu.memory_space<vmem>>, %arg10: memref<128x128xbf16, #tpu.memory_space<vmem>>, %arg11: memref<1x128xf32, #tpu.memory_space<vmem>>, %arg12: memref<128x128xbf16, #tpu.memory_space<vmem>>, %arg13: memref<1x128xf32, #tpu.memory_space<vmem>>, %arg14: memref<128x128xbf16, #tpu.memory_space<vmem>>, %arg15: memref<1x128xf32, #tpu.memory_space<vmem>>, %arg16: memref<2x64x128xf32, #tpu.memory_space<vmem>>, %arg17: memref<2x10x10x128xf32, #tpu.memory_space<vmem>>) attributes {dimension_semantics = [], scalar_prefetch = 0 : i64, scratch_operands = 1 : i64, tpu.core_type = #tpu.core_type<tc>} {
    %c0 = arith.constant 0 : index
    %c0_0 = arith.constant 0 : index
    %0 = vector.load %arg0[%c0, %c0_0] : memref<128x128xbf16, #tpu.memory_space<vmem>>, vector<128x128xbf16>
    %c0_1 = arith.constant 0 : index
    %c0_2 = arith.constant 0 : index
    %1 = vector.load %arg1[%c0_1, %c0_2] : memref<128x128xbf16, #tpu.memory_space<vmem>>, vector<128x128xbf16>
    %cst = arith.constant dense<0.000000e+00> : vector<128x128xf32>
    %2 = tpu.matmul %0, %1, %cst {dimension_numbers = #tpu.dot_dimension_numbers<[1], [0], [0], [1], [0, 0, 1, 1], [], []>} : vector<128x128xbf16>, vector<128x128xbf16>, vector<128x128xf32> -> vector<128x128xf32>
    %c0_3 = arith.constant 0 : index
    %c0_4 = arith.constant 0 : index
    %3 = vector.load %arg2[%c0_3, %c0_4] : memref<1x128xf32, #tpu.memory_space<vmem>>, vector<1x128xf32>
    %c0_5 = arith.constant 0 : index
    %c0_6 = arith.constant 0 : index
    %4 = vector.load %arg3[%c0_5, %c0_6] : memref<1x128xf32, #tpu.memory_space<vmem>>, vector<1x128xf32>
    %cst_7 = arith.constant dense<0.000000e+00> : vector<128xf32>
    %5 = vector.multi_reduction <add>, %2, %cst_7 [0] : vector<128x128xf32> to vector<128xf32>
    %6 = vector.shape_cast %5 : vector<128xf32> to vector<1x128xf32>
    %cst_8 = arith.constant 7.812500e-03 : f32
    %7 = vector.broadcast %cst_8 : f32 to vector<1x128xf32>
    %8 = arith.mulf %6, %7 : vector<1x128xf32>
    %9 = arith.mulf %2, %2 : vector<128x128xf32>
    %cst_9 = arith.constant dense<0.000000e+00> : vector<128xf32>
    %10 = vector.multi_reduction <add>, %9, %cst_9 [0] : vector<128x128xf32> to vector<128xf32>
    %11 = vector.shape_cast %10 : vector<128xf32> to vector<1x128xf32>
    %cst_10 = arith.constant 7.812500e-03 : f32
    %12 = vector.broadcast %cst_10 : f32 to vector<1x128xf32>
    %13 = arith.mulf %11, %12 : vector<1x128xf32>
    %14 = arith.mulf %8, %8 : vector<1x128xf32>
    %15 = arith.subf %13, %14 : vector<1x128xf32>
    %cst_11 = arith.constant 9.99999974E-6 : f32
    %16 = vector.broadcast %cst_11 : f32 to vector<1x128xf32>
    %17 = arith.addf %15, %16 : vector<1x128xf32>
    %18 = math.rsqrt %17 : vector<1x128xf32>
    %19 = arith.mulf %3, %18 : vector<1x128xf32>
    %20 = vector.broadcast %19 : vector<1x128xf32> to vector<128x128xf32>
    %21 = arith.mulf %2, %20 : vector<128x128xf32>
    %22 = arith.mulf %8, %19 : vector<1x128xf32>
    %23 = arith.subf %4, %22 : vector<1x128xf32>
    %24 = vector.broadcast %23 : vector<1x128xf32> to vector<128x128xf32>
    %25 = arith.addf %21, %24 : vector<128x128xf32>
    %cst_12 = arith.constant 0.000000e+00 : f32
    %26 = vector.broadcast %cst_12 : f32 to vector<128x128xf32>
    %27 = arith.maximumf %25, %26 : vector<128x128xf32>
    %cst_13 = arith.constant 0.000000e+00 : f32
    %28 = vector.broadcast %cst_13 : f32 to vector<2x10x10x128xf32>
    %c0_14 = arith.constant 0 : index
    %c0_15 = arith.constant 0 : index
    %c0_16 = arith.constant 0 : index
    %c0_17 = arith.constant 0 : index
    %29 = vector.load %arg17[%c0_14, %c0_15, %c0_16, %c0_17] : memref<2x10x10x128xf32, #tpu.memory_space<vmem>>, vector<2x10x10x128xf32>
    tpu.vector_store %arg17[%c0_14, %c0_15, %c0_16, %c0_17], %28 {strides = array<i32>} : memref<2x10x10x128xf32, #tpu.memory_space<vmem>>, vector<2x10x10x128xf32>,
    %30 = vector.shape_cast %27 : vector<128x128xf32> to vector<2x8x8x128xf32>
    %c0_18 = arith.constant 0 : index
    %c1 = arith.constant 1 : index
    %c1_19 = arith.constant 1 : index
    %c0_20 = arith.constant 0 : index
    %31 = vector.load %arg17[%c0_18, %c1, %c1_19, %c0_20] : memref<2x10x10x128xf32, #tpu.memory_space<vmem>>, vector<2x8x8x128xf32>
    tpu.vector_store %arg17[%c0_18, %c1, %c1_19, %c0_20], %30 {strides = array<i32>} : memref<2x10x10x128xf32, #tpu.memory_space<vmem>>, vector<2x8x8x128xf32>,
    %c0_21 = arith.constant 0 : index
    %c0_22 = arith.constant 0 : index
    %c0_23 = arith.constant 0 : index
    %c0_24 = arith.constant 0 : index
    %32 = vector.load %arg17[%c0_21, %c0_22, %c0_23, %c0_24] : memref<2x10x10x128xf32, #tpu.memory_space<vmem>>, vector<2x8x8x128xf32>
    %33 = vector.shape_cast %32 : vector<2x8x8x128xf32> to vector<128x128xf32>
    %34 = arith.truncf %33 : vector<128x128xf32> to vector<128x128xbf16>
    %c0_25 = arith.constant 0 : index
    %c0_26 = arith.constant 0 : index
    %c1_27 = arith.constant 1 : index
    %c0_28 = arith.constant 0 : index
    %35 = vector.load %arg17[%c0_25, %c0_26, %c1_27, %c0_28] : memref<2x10x10x128xf32, #tpu.memory_space<vmem>>, vector<2x8x8x128xf32>
    %36 = vector.shape_cast %35 : vector<2x8x8x128xf32> to vector<128x128xf32>
    %37 = arith.truncf %36 : vector<128x128xf32> to vector<128x128xbf16>
    %c0_29 = arith.constant 0 : index
    %c0_30 = arith.constant 0 : index
    %c2 = arith.constant 2 : index
    %c0_31 = arith.constant 0 : index
    %38 = vector.load %arg17[%c0_29, %c0_30, %c2, %c0_31] : memref<2x10x10x128xf32, #tpu.memory_space<vmem>>, vector<2x8x8x128xf32>
    %39 = vector.shape_cast %38 : vector<2x8x8x128xf32> to vector<128x128xf32>
    %40 = arith.truncf %39 : vector<128x128xf32> to vector<128x128xbf16>
    %c0_32 = arith.constant 0 : index
    %c1_33 = arith.constant 1 : index
    %c0_34 = arith.constant 0 : index
    %c0_35 = arith.constant 0 : index
    %41 = vector.load %arg17[%c0_32, %c1_33, %c0_34, %c0_35] : memref<2x10x10x128xf32, #tpu.memory_space<vmem>>, vector<2x8x8x128xf32>
    %42 = vector.shape_cast %41 : vector<2x8x8x128xf32> to vector<128x128xf32>
    %43 = arith.truncf %42 : vector<128x128xf32> to vector<128x128xbf16>
    %c0_36 = arith.constant 0 : index
    %c1_37 = arith.constant 1 : index
    %c1_38 = arith.constant 1 : index
    %c0_39 = arith.constant 0 : index
    %44 = vector.load %arg17[%c0_36, %c1_37, %c1_38, %c0_39] : memref<2x10x10x128xf32, #tpu.memory_space<vmem>>, vector<2x8x8x128xf32>
    %45 = vector.shape_cast %44 : vector<2x8x8x128xf32> to vector<128x128xf32>
    %46 = arith.truncf %45 : vector<128x128xf32> to vector<128x128xbf16>
    %c0_40 = arith.constant 0 : index
    %c1_41 = arith.constant 1 : index
    %c2_42 = arith.constant 2 : index
    %c0_43 = arith.constant 0 : index
    %47 = vector.load %arg17[%c0_40, %c1_41, %c2_42, %c0_43] : memref<2x10x10x128xf32, #tpu.memory_space<vmem>>, vector<2x8x8x128xf32>
    %48 = vector.shape_cast %47 : vector<2x8x8x128xf32> to vector<128x128xf32>
    %49 = arith.truncf %48 : vector<128x128xf32> to vector<128x128xbf16>
    %c0_44 = arith.constant 0 : index
    %c2_45 = arith.constant 2 : index
    %c0_46 = arith.constant 0 : index
    %c0_47 = arith.constant 0 : index
    %50 = vector.load %arg17[%c0_44, %c2_45, %c0_46, %c0_47] : memref<2x10x10x128xf32, #tpu.memory_space<vmem>>, vector<2x8x8x128xf32>
    %51 = vector.shape_cast %50 : vector<2x8x8x128xf32> to vector<128x128xf32>
    %52 = arith.truncf %51 : vector<128x128xf32> to vector<128x128xbf16>
    %c0_48 = arith.constant 0 : index
    %c2_49 = arith.constant 2 : index
    %c1_50 = arith.constant 1 : index
    %c0_51 = arith.constant 0 : index
    %53 = vector.load %arg17[%c0_48, %c2_49, %c1_50, %c0_51] : memref<2x10x10x128xf32, #tpu.memory_space<vmem>>, vector<2x8x8x128xf32>
    %54 = vector.shape_cast %53 : vector<2x8x8x128xf32> to vector<128x128xf32>
    %55 = arith.truncf %54 : vector<128x128xf32> to vector<128x128xbf16>
    %c0_52 = arith.constant 0 : index
    %c2_53 = arith.constant 2 : index
    %c2_54 = arith.constant 2 : index
    %c0_55 = arith.constant 0 : index
    %56 = vector.load %arg17[%c0_52, %c2_53, %c2_54, %c0_55] : memref<2x10x10x128xf32, #tpu.memory_space<vmem>>, vector<2x8x8x128xf32>
    %57 = vector.shape_cast %56 : vector<2x8x8x128xf32> to vector<128x128xf32>
    %58 = arith.truncf %57 : vector<128x128xf32> to vector<128x128xbf16>
    %59 = tpu.concatenate %34, %37, %40, %43, %46, %49, %52, %55, %58 in 1 : vector<128x128xbf16>, vector<128x128xbf16>, vector<128x128xbf16>, vector<128x128xbf16>, vector<128x128xbf16>, vector<128x128xbf16>, vector<128x128xbf16>, vector<128x128xbf16>, vector<128x128xbf16> -> vector<128x1152xbf16>
    %c0_56 = arith.constant 0 : index
    %c0_57 = arith.constant 0 : index
    %60 = vector.load %arg4[%c0_56, %c0_57] : memref<1152x128xbf16, #tpu.memory_space<vmem>>, vector<1152x128xbf16>
    %cst_58 = arith.constant dense<0.000000e+00> : vector<128x128xf32>
    %61 = tpu.matmul %59, %60, %cst_58 {dimension_numbers = #tpu.dot_dimension_numbers<[1], [0], [0], [1], [0, 0, 1, 1], [], []>} : vector<128x1152xbf16>, vector<1152x128xbf16>, vector<128x128xf32> -> vector<128x128xf32>
    %c0_59 = arith.constant 0 : index
    %c0_60 = arith.constant 0 : index
    %62 = vector.load %arg5[%c0_59, %c0_60] : memref<1x128xf32, #tpu.memory_space<vmem>>, vector<1x128xf32>
    %c0_61 = arith.constant 0 : index
    %c0_62 = arith.constant 0 : index
    %63 = vector.load %arg6[%c0_61, %c0_62] : memref<1x128xf32, #tpu.memory_space<vmem>>, vector<1x128xf32>
    %cst_63 = arith.constant dense<0.000000e+00> : vector<128xf32>
    %64 = vector.multi_reduction <add>, %61, %cst_63 [0] : vector<128x128xf32> to vector<128xf32>
    %65 = vector.shape_cast %64 : vector<128xf32> to vector<1x128xf32>
    %cst_64 = arith.constant 7.812500e-03 : f32
    %66 = vector.broadcast %cst_64 : f32 to vector<1x128xf32>
    %67 = arith.mulf %65, %66 : vector<1x128xf32>
    %68 = arith.mulf %61, %61 : vector<128x128xf32>
    %cst_65 = arith.constant dense<0.000000e+00> : vector<128xf32>
    %69 = vector.multi_reduction <add>, %68, %cst_65 [0] : vector<128x128xf32> to vector<128xf32>
    %70 = vector.shape_cast %69 : vector<128xf32> to vector<1x128xf32>
    %cst_66 = arith.constant 7.812500e-03 : f32
    %71 = vector.broadcast %cst_66 : f32 to vector<1x128xf32>
    %72 = arith.mulf %70, %71 : vector<1x128xf32>
    %73 = arith.mulf %67, %67 : vector<1x128xf32>
    %74 = arith.subf %72, %73 : vector<1x128xf32>
    %cst_67 = arith.constant 9.99999974E-6 : f32
    %75 = vector.broadcast %cst_67 : f32 to vector<1x128xf32>
    %76 = arith.addf %74, %75 : vector<1x128xf32>
    %77 = math.rsqrt %76 : vector<1x128xf32>
    %78 = arith.mulf %62, %77 : vector<1x128xf32>
    %79 = vector.broadcast %78 : vector<1x128xf32> to vector<128x128xf32>
    %80 = arith.mulf %61, %79 : vector<128x128xf32>
    %81 = arith.mulf %67, %78 : vector<1x128xf32>
    %82 = arith.subf %63, %81 : vector<1x128xf32>
    %83 = vector.broadcast %82 : vector<1x128xf32> to vector<128x128xf32>
    %84 = arith.addf %80, %83 : vector<128x128xf32>
    %cst_68 = arith.constant 0.000000e+00 : f32
    %85 = vector.broadcast %cst_68 : f32 to vector<128x128xf32>
    %86 = arith.maximumf %84, %85 : vector<128x128xf32>
    %87 = arith.truncf %86 : vector<128x128xf32> to vector<128x128xbf16>
    %c0_69 = arith.constant 0 : index
    %c0_70 = arith.constant 0 : index
    %88 = vector.load %arg7[%c0_69, %c0_70] : memref<128x128xbf16, #tpu.memory_space<vmem>>, vector<128x128xbf16>
    %cst_71 = arith.constant dense<0.000000e+00> : vector<128x128xf32>
    %89 = tpu.matmul %87, %88, %cst_71 {dimension_numbers = #tpu.dot_dimension_numbers<[1], [0], [0], [1], [0, 0, 1, 1], [], []>} : vector<128x128xbf16>, vector<128x128xbf16>, vector<128x128xf32> -> vector<128x128xf32>
    %c0_72 = arith.constant 0 : index
    %c0_73 = arith.constant 0 : index
    %90 = vector.load %arg8[%c0_72, %c0_73] : memref<1x128xf32, #tpu.memory_space<vmem>>, vector<1x128xf32>
    %c0_74 = arith.constant 0 : index
    %c0_75 = arith.constant 0 : index
    %91 = vector.load %arg9[%c0_74, %c0_75] : memref<1x128xf32, #tpu.memory_space<vmem>>, vector<1x128xf32>
    %cst_76 = arith.constant dense<0.000000e+00> : vector<128xf32>
    %92 = vector.multi_reduction <add>, %89, %cst_76 [0] : vector<128x128xf32> to vector<128xf32>
    %93 = vector.shape_cast %92 : vector<128xf32> to vector<1x128xf32>
    %cst_77 = arith.constant 7.812500e-03 : f32
    %94 = vector.broadcast %cst_77 : f32 to vector<1x128xf32>
    %95 = arith.mulf %93, %94 : vector<1x128xf32>
    %96 = arith.mulf %89, %89 : vector<128x128xf32>
    %cst_78 = arith.constant dense<0.000000e+00> : vector<128xf32>
    %97 = vector.multi_reduction <add>, %96, %cst_78 [0] : vector<128x128xf32> to vector<128xf32>
    %98 = vector.shape_cast %97 : vector<128xf32> to vector<1x128xf32>
    %cst_79 = arith.constant 7.812500e-03 : f32
    %99 = vector.broadcast %cst_79 : f32 to vector<1x128xf32>
    %100 = arith.mulf %98, %99 : vector<1x128xf32>
    %101 = arith.mulf %95, %95 : vector<1x128xf32>
    %102 = arith.subf %100, %101 : vector<1x128xf32>
    %cst_80 = arith.constant 9.99999974E-6 : f32
    %103 = vector.broadcast %cst_80 : f32 to vector<1x128xf32>
    %104 = arith.addf %102, %103 : vector<1x128xf32>
    %105 = math.rsqrt %104 : vector<1x128xf32>
    %106 = arith.mulf %90, %105 : vector<1x128xf32>
    %107 = vector.broadcast %106 : vector<1x128xf32> to vector<128x128xf32>
    %108 = arith.mulf %89, %107 : vector<128x128xf32>
    %109 = arith.mulf %95, %106 : vector<1x128xf32>
    %110 = arith.subf %91, %109 : vector<1x128xf32>
    %111 = vector.broadcast %110 : vector<1x128xf32> to vector<128x128xf32>
    %112 = arith.addf %108, %111 : vector<128x128xf32>
    %113 = vector.shape_cast %112 : vector<128x128xf32> to vector<2x64x128xf32>
    %cst_81 = arith.constant dense<0.000000e+00> : vector<2x128xf32>
    %114 = vector.multi_reduction <add>, %113, %cst_81 [1] : vector<2x64x128xf32> to vector<2x128xf32>
    %cst_82 = arith.constant 6.400000e+01 : f32
    %115 = vector.broadcast %cst_82 : f32 to vector<2x128xf32>
    %116 = arith.divf %114, %115 : vector<2x128xf32>
    %117 = arith.truncf %116 : vector<2x128xf32> to vector<2x128xbf16>
    %c0_83 = arith.constant 0 : index
    %c0_84 = arith.constant 0 : index
    %118 = vector.load %arg10[%c0_83, %c0_84] : memref<128x128xbf16, #tpu.memory_space<vmem>>, vector<128x128xbf16>
    %cst_85 = arith.constant dense<0.000000e+00> : vector<2x128xf32>
    %119 = tpu.matmul %117, %118, %cst_85 {dimension_numbers = #tpu.dot_dimension_numbers<[1], [0], [0], [1], [0, 0, 1, 1], [], []>} : vector<2x128xbf16>, vector<128x128xbf16>, vector<2x128xf32> -> vector<2x128xf32>
    %c0_86 = arith.constant 0 : index
    %c0_87 = arith.constant 0 : index
    %120 = vector.load %arg11[%c0_86, %c0_87] : memref<1x128xf32, #tpu.memory_space<vmem>>, vector<1x128xf32>
    %121 = vector.broadcast %120 : vector<1x128xf32> to vector<2x128xf32>
    %122 = arith.addf %119, %121 : vector<2x128xf32>
    %cst_88 = arith.constant 0.000000e+00 : f32
    %123 = vector.broadcast %cst_88 : f32 to vector<2x128xf32>
    %124 = arith.maximumf %122, %123 : vector<2x128xf32>
    %125 = arith.truncf %124 : vector<2x128xf32> to vector<2x128xbf16>
    %c0_89 = arith.constant 0 : index
    %c0_90 = arith.constant 0 : index
    %126 = vector.load %arg12[%c0_89, %c0_90] : memref<128x128xbf16, #tpu.memory_space<vmem>>, vector<128x128xbf16>
    %cst_91 = arith.constant dense<0.000000e+00> : vector<2x128xf32>
    %127 = tpu.matmul %125, %126, %cst_91 {dimension_numbers = #tpu.dot_dimension_numbers<[1], [0], [0], [1], [0, 0, 1, 1], [], []>} : vector<2x128xbf16>, vector<128x128xbf16>, vector<2x128xf32> -> vector<2x128xf32>
    %c0_92 = arith.constant 0 : index
    %c0_93 = arith.constant 0 : index
    %128 = vector.load %arg13[%c0_92, %c0_93] : memref<1x128xf32, #tpu.memory_space<vmem>>, vector<1x128xf32>
    %129 = vector.broadcast %128 : vector<1x128xf32> to vector<2x128xf32>
    %130 = arith.addf %127, %129 : vector<2x128xf32>
    %131 = arith.negf %130 : vector<2x128xf32>
    %132 = math.exp %131 : vector<2x128xf32>
    %cst_94 = arith.constant 1.000000e+00 : f32
    %133 = vector.broadcast %cst_94 : f32 to vector<2x128xf32>
    %134 = arith.addf %133, %132 : vector<2x128xf32>
    %135 = arith.divf %133, %134 : vector<2x128xf32>
    %c0_95 = arith.constant 0 : index
    %c0_96 = arith.constant 0 : index
    %136 = vector.load %arg14[%c0_95, %c0_96] : memref<128x128xbf16, #tpu.memory_space<vmem>>, vector<128x128xbf16>
    %cst_97 = arith.constant dense<0.000000e+00> : vector<128x128xf32>
    %137 = tpu.matmul %0, %136, %cst_97 {dimension_numbers = #tpu.dot_dimension_numbers<[1], [0], [0], [1], [0, 0, 1, 1], [], []>} : vector<128x128xbf16>, vector<128x128xbf16>, vector<128x128xf32> -> vector<128x128xf32>
    %c0_98 = arith.constant 0 : index
    %c0_99 = arith.constant 0 : index
    %138 = vector.load %arg15[%c0_98, %c0_99] : memref<1x128xf32, #tpu.memory_space<vmem>>, vector<1x128xf32>
    %139 = vector.broadcast %138 : vector<1x128xf32> to vector<128x128xf32>
    %140 = arith.addf %137, %139 : vector<128x128xf32>
    %141 = vector.shape_cast %135 : vector<2x128xf32> to vector<2x1x128xf32>
    %142 = vector.broadcast %141 : vector<2x1x128xf32> to vector<2x64x128xf32>
    %143 = arith.mulf %113, %142 : vector<2x64x128xf32>
    %144 = vector.shape_cast %140 : vector<128x128xf32> to vector<2x64x128xf32>
    %145 = arith.addf %143, %144 : vector<2x64x128xf32>
    %cst_100 = arith.constant 0.000000e+00 : f32
    %146 = vector.broadcast %cst_100 : f32 to vector<2x64x128xf32>
    %147 = arith.maximumf %145, %146 : vector<2x64x128xf32>
    %c0_101 = arith.constant 0 : index
    %c0_102 = arith.constant 0 : index
    %c0_103 = arith.constant 0 : index
    %148 = vector.load %arg16[%c0_101, %c0_102, %c0_103] : memref<2x64x128xf32, #tpu.memory_space<vmem>>, vector<2x64x128xf32>
    tpu.vector_store %arg16[%c0_101, %c0_102, %c0_103], %147 {strides = array<i32>} : memref<2x64x128xf32, #tpu.memory_space<vmem>>, vector<2x64x128xf32>,
    return
  }
}

</mosaic_0001>

<llo_original>
// kernel: tpu_custom_call.1
$region0: #{tpu_custom_call.1}
  #allocation0 [shape = 'u32[]', space=smem, size = 0x4, offset = 0x4, fixed_abs, tag = 'smem constant byte address 0x4 - core index']
  #allocation1 [shape = 'u32[72,128]{1,0:T(1,128)}', space=vmem, size = 0x9000, scoped, tag = 'internal scratch']
  #allocation2 [shape = 'f32[2,10,10,128]{3,2,1,0:T(8,128)}', space=vmem, size = 0x28000, scoped, tag = 'scratch operand']
  %s0 = inlined_call_operand.hbm [shape: bf16[128,128], index: 0, kind: input, shape index: {}]
  %s1 = inlined_call_operand.hbm [shape: bf16[128,128], index: 1, kind: input, shape index: {}]
  %s2 = inlined_call_operand.vmem [shape: f32[1,128], index: 2, kind: input, shape index: {}]
  %s3 = inlined_call_operand.vmem [shape: f32[1,128], index: 3, kind: input, shape index: {}]
  %s4 = inlined_call_operand.hbm [shape: bf16[1152,128], index: 4, kind: input, shape index: {}]
  %s5 = inlined_call_operand.vmem [shape: f32[1,128], index: 5, kind: input, shape index: {}]
  %s6 = inlined_call_operand.vmem [shape: f32[1,128], index: 6, kind: input, shape index: {}]
  %s7 = inlined_call_operand.hbm [shape: bf16[128,128], index: 7, kind: input, shape index: {}]
  %s8 = inlined_call_operand.vmem [shape: f32[1,128], index: 8, kind: input, shape index: {}]
  %s9 = inlined_call_operand.vmem [shape: f32[1,128], index: 9, kind: input, shape index: {}]
  %s10 = inlined_call_operand.hbm [shape: bf16[128,128], index: 10, kind: input, shape index: {}]
  %s11 = inlined_call_operand.vmem [shape: f32[1,128], index: 11, kind: input, shape index: {}]
  %s12 = inlined_call_operand.hbm [shape: bf16[128,128], index: 12, kind: input, shape index: {}]
  %s13 = inlined_call_operand.vmem [shape: f32[1,128], index: 13, kind: input, shape index: {}]
  %s14 = inlined_call_operand.hbm [shape: bf16[128,128], index: 14, kind: input, shape index: {}]
  %s15 = inlined_call_operand.vmem [shape: f32[1,128], index: 15, kind: input, shape index: {}]
  %s16 = inlined_call_operand.hbm [shape: f32[2,64,128], index: 16, kind: output, shape index: {}]
  %s17 = sld [smem:[#allocation0]]
  $region102: #{tpu_custom_call.1} parent=0
    _
  %s19 = ssub.s32 1, %s17
  %s20 = scalar_select 0, %s19, %s17
  $region1: #{tpu_custom_call.1} parent=0
    #allocation3 [shape = 'u8[32768]{0}', space=vmem, size = 0x8000, scoped, tag = 'input window, operand 0, single buffered']
    #allocation4 [shape = 's32[1]{0}', space=sflag, size = 0x4, scoped, tag = 'scoped memory for tpu_custom_call.1']
    #allocation5 [shape = 's32[1]{0}', space=sflag, size = 0x4, scoped, tag = 'scoped memory for tpu_custom_call.1']
    #allocation6 [shape = 'u8[32768]{0}', space=vmem, size = 0x8000, scoped, tag = 'input window, operand 1, single buffered']
    #allocation7 [shape = 's32[1]{0}', space=sflag, size = 0x4, scoped, tag = 'scoped memory for tpu_custom_call.1']
    #allocation8 [shape = 'u8[294912]{0}', space=vmem, size = 0x48000, scoped, tag = 'input window, operand 4, single buffered']
    #allocation9 [shape = 'u8[32768]{0}', space=vmem, size = 0x8000, scoped, tag = 'input window, operand 7, single buffered']
    #allocation10 [shape = 's32[1]{0}', space=sflag, size = 0x4, scoped, tag = 'scoped memory for tpu_custom_call.1']
    #allocation11 [shape = 'u8[32768]{0}', space=vmem, size = 0x8000, scoped, tag = 'input window, operand 10, single buffered']
    #allocation12 [shape = 'u8[32768]{0}', space=vmem, size = 0x8000, scoped, tag = 'input window, operand 12, single buffered']
    #allocation13 [shape = 's32[1]{0}', space=sflag, size = 0x4, scoped, tag = 'scoped memory for tpu_custom_call.1']
    #allocation14 [shape = 'u8[32768]{0}', space=vmem, size = 0x8000, scoped, tag = 'input window, operand 14, single buffered']
    #allocation15 [shape = 'u8[65536]{0}', space=vmem, size = 0x10000, scoped, tag = 'output window, operand 0, single buffered']
    %21 = vsyncpa [#allocation4], 0
    %22 = vsyncpa [#allocation7], 0
    %23 = vsyncpa [#allocation10], 0
    %24 = vsyncpa [#allocation13], 0
    %25 = vsyncpa [#allocation5], 0
    // Predicated region
    $region2: #{tpu_custom_call.1} parent=1 // pred_check
      _
    $region3: #{tpu_custom_call.1} parent=1 // pred_check_branch
      %27 = sbr.rel (0) target = $region5
    $region4: #{tpu_custom_call.1} parent=1 // pred_region
      %29 = vsyncadd [#allocation4], 0
      %s30 = sshll.u32 %s0, 4
      %s31 = int_to_ptr.hbm [resolvable:$true] %s30
      %s32 = sshll.u32 [#allocation3], 4
      %s33 = int_to_ptr.vmem [resolvable:$true] %s32
      %38 = dma.hbm_to_vmem [thread:$0]  %s31, 1024, %s33, [#allocation4], 64, 64, 4
    $region5: #{tpu_custom_call.1} parent=1 // pred_fallthru
      _
    // Predicated region
    $region6: #{tpu_custom_call.1} parent=1 // pred_check
      _
    $region7: #{tpu_custom_call.1} parent=1 // pred_check_branch
      %40 = sbr.rel (0) target = $region9
    $region8: #{tpu_custom_call.1} parent=1 // pred_region
      %42 = vsyncadd [#allocation7], 0
      %s43 = sshll.u32 %s1, 4
      %s44 = int_to_ptr.hbm [resolvable:$true] %s43
      %s45 = sshll.u32 [#allocation6], 4
      %s46 = int_to_ptr.vmem [resolvable:$true] %s45
      %51 = dma.hbm_to_vmem [thread:$0]  %s44, 1024, %s46, [#allocation7], 64, 64, 4
    $region9: #{tpu_custom_call.1} parent=1 // pred_fallthru
      _
    // Predicated region
    $region10: #{tpu_custom_call.1} parent=1 // pred_check
      _
    $region11: #{tpu_custom_call.1} parent=1 // pred_check_branch
      %53 = sbr.rel (0) target = $region13
    $region12: #{tpu_custom_call.1} parent=1 // pred_region
      _
    $region13: #{tpu_custom_call.1} parent=1 // pred_fallthru
      _
    // Predicated region
    $region14: #{tpu_custom_call.1} parent=1 // pred_check
      _
    $region15: #{tpu_custom_call.1} parent=1 // pred_check_branch
      %55 = sbr.rel (0) target = $region17
    $region16: #{tpu_custom_call.1} parent=1 // pred_region
      _
    $region17: #{tpu_custom_call.1} parent=1 // pred_fallthru
      _
    // Predicated region
    $region18: #{tpu_custom_call.1} parent=1 // pred_check
      _
    $region19: #{tpu_custom_call.1} parent=1 // pred_check_branch
      %57 = sbr.rel (0) target = $region21
    $region20: #{tpu_custom_call.1} parent=1 // pred_region
      %59 = vsyncadd [#allocation7], 0
      %s60 = sshll.u32 %s4, 4
      %s61 = int_to_ptr.hbm [resolvable:$true] %s60
      %s62 = sshll.u32 [#allocation8], 4
      %s63 = int_to_ptr.vmem [resolvable:$true] %s62
      %68 = dma.hbm_to_vmem [thread:$0]  %s61, 9216, %s63, [#allocation7], 64, 64, 4
    $region21: #{tpu_custom_call.1} parent=1 // pred_fallthru
      _
    // Predicated region
    $region22: #{tpu_custom_call.1} parent=1 // pred_check
      _
    $region23: #{tpu_custom_call.1} parent=1 // pred_check_branch
      %70 = sbr.rel (0) target = $region25
    $region24: #{tpu_custom_call.1} parent=1 // pred_region
      _
    $region25: #{tpu_custom_call.1} parent=1 // pred_fallthru
      _
    // Predicated region
    $region26: #{tpu_custom_call.1} parent=1 // pred_check
      _
    $region27: #{tpu_custom_call.1} parent=1 // pred_check_branch
      %72 = sbr.rel (0) target = $region29
    $region28: #{tpu_custom_call.1} parent=1 // pred_region
      _
    $region29: #{tpu_custom_call.1} parent=1 // pred_fallthru
      _
    // Predicated region
    $region30: #{tpu_custom_call.1} parent=1 // pred_check
      _
    $region31: #{tpu_custom_call.1} parent=1 // pred_check_branch
      %74 = sbr.rel (0) target = $region33
    $region32: #{tpu_custom_call.1} parent=1 // pred_region
      %76 = vsyncadd [#allocation10], 0
      %s77 = sshll.u32 %s7, 4
      %s78 = int_to_ptr.hbm [resolvable:$true] %s77
      %s79 = sshll.u32 [#allocation9], 4
      %s80 = int_to_ptr.vmem [resolvable:$true] %s79
      %85 = dma.hbm_to_vmem [thread:$0]  %s78, 1024, %s80, [#allocation10], 64, 64, 4
    $region33: #{tpu_custom_call.1} parent=1 // pred_fallthru
      _
    // Predicated region
    $region34: #{tpu_custom_call.1} parent=1 // pred_check
      _
    $region35: #{tpu_custom_call.1} parent=1 // pred_check_branch
      %87 = sbr.rel (0) target = $region37
    $region36: #{tpu_custom_call.1} parent=1 // pred_region
      _
    $region37: #{tpu_custom_call.1} parent=1 // pred_fallthru
      _
    // Predicated region
    $region38: #{tpu_custom_call.1} parent=1 // pred_check
      _
    $region39: #{tpu_custom_call.1} parent=1 // pred_check_branch
      %89 = sbr.rel (0) target = $region41
    $region40: #{tpu_custom_call.1} parent=1 // pred_region
      _
    $region41: #{tpu_custom_call.1} parent=1 // pred_fallthru
      _
    // Predicated region
    $region42: #{tpu_custom_call.1} parent=1 // pred_check
      _
    $region43: #{tpu_custom_call.1} parent=1 // pred_check_branch
      %91 = sbr.rel (0) target = $region45
    $region44: #{tpu_custom_call.1} parent=1 // pred_region
      %93 = vsyncadd [#allocation10], 0
      %s94 = sshll.u32 %s10, 4
      %s95 = int_to_ptr.hbm [resolvable:$true] %s94
      %s96 = sshll.u32 [#allocation11], 4
      %s97 = int_to_ptr.vmem [resolvable:$true] %s96
      %102 = dma.hbm_to_vmem [thread:$0]  %s95, 1024, %s97, [#allocation10], 64, 64, 4
    $region45: #{tpu_custom_call.1} parent=1 // pred_fallthru
      _
    // Predicated region
    $region46: #{tpu_custom_call.1} parent=1 // pred_check
      _
    $region47: #{tpu_custom_call.1} parent=1 // pred_check_branch
      %104 = sbr.rel (0) target = $region49
    $region48: #{tpu_custom_call.1} parent=1 // pred_region
      _
    $region49: #{tpu_custom_call.1} parent=1 // pred_fallthru
      _
    // Predicated region
    $region50: #{tpu_custom_call.1} parent=1 // pred_check
      _
    $region51: #{tpu_custom_call.1} parent=1 // pred_check_branch
      %106 = sbr.rel (0) target = $region53
    $region52: #{tpu_custom_call.1} parent=1 // pred_region
      %108 = vsyncadd [#allocation13], 0
      %s109 = sshll.u32 %s12, 4
      %s110 = int_to_ptr.hbm [resolvable:$true] %s109
      %s111 = sshll.u32 [#allocation12], 4
      %s112 = int_to_ptr.vmem [resolvable:$true] %s111
      %117 = dma.hbm_to_vmem [thread:$0]  %s110, 1024, %s112, [#allocation13], 64, 64, 4
    $region53: #{tpu_custom_call.1} parent=1 // pred_fallthru
      _
    // Predicated region
    $region54: #{tpu_custom_call.1} parent=1 // pred_check
      _
    $region55: #{tpu_custom_call.1} parent=1 // pred_check_branch
      %119 = sbr.rel (0) target = $region57
    $region56: #{tpu_custom_call.1} parent=1 // pred_region
      _
    $region57: #{tpu_custom_call.1} parent=1 // pred_fallthru
      _
    // Predicated region
    $region58: #{tpu_custom_call.1} parent=1 // pred_check
      _
    $region59: #{tpu_custom_call.1} parent=1 // pred_check_branch
      %121 = sbr.rel (0) target = $region61
    $region60: #{tpu_custom_call.1} parent=1 // pred_region
      %123 = vsyncadd [#allocation13], 0
      %s124 = sshll.u32 %s14, 4
      %s125 = int_to_ptr.hbm [resolvable:$true] %s124
      %s126 = sshll.u32 [#allocation14], 4
      %s127 = int_to_ptr.vmem [resolvable:$true] %s126
      %132 = dma.hbm_to_vmem [thread:$0]  %s125, 1024, %s127, [#allocation13], 64, 64, 4
    $region61: #{tpu_custom_call.1} parent=1 // pred_fallthru
      _
    // Predicated region
    $region62: #{tpu_custom_call.1} parent=1 // pred_check
      _
    $region63: #{tpu_custom_call.1} parent=1 // pred_check_branch
      %134 = sbr.rel (0) target = $region65
    $region64: #{tpu_custom_call.1} parent=1 // pred_region
      _
    $region65: #{tpu_custom_call.1} parent=1 // pred_fallthru
      _
    // Predicated region
    $region66: #{tpu_custom_call.1} parent=1 // pred_check
      _
    $region67: #{tpu_custom_call.1} parent=1 // pred_check_branch
      %136 = sbr.rel (0) target = $region69
    $region68: #{tpu_custom_call.1} parent=1 // pred_region
      %138 = dma.done [#allocation4], 1024
    $region69: #{tpu_custom_call.1} parent=1 // pred_fallthru
      _
    // Predicated region
    $region70: #{tpu_custom_call.1} parent=1 // pred_check
      _
    $region71: #{tpu_custom_call.1} parent=1 // pred_check_branch
      %140 = sbr.rel (0) target = $region73
    $region72: #{tpu_custom_call.1} parent=1 // pred_region
      %142 = dma.done [#allocation7], 1024
    $region73: #{tpu_custom_call.1} parent=1 // pred_fallthru
      _
    // Predicated region
    $region74: #{tpu_custom_call.1} parent=1 // pred_check
      _
    $region75: #{tpu_custom_call.1} parent=1 // pred_check_branch
      %144 = sbr.rel (0) target = $region77
    $region76: #{tpu_custom_call.1} parent=1 // pred_region
      %146 = dma.done [#allocation7], 9216
    $region77: #{tpu_custom_call.1} parent=1 // pred_fallthru
      _
    // Predicated region
    $region78: #{tpu_custom_call.1} parent=1 // pred_check
      _
    $region79: #{tpu_custom_call.1} parent=1 // pred_check_branch
      %148 = sbr.rel (0) target = $region81
    $region80: #{tpu_custom_call.1} parent=1 // pred_region
      %150 = dma.done [#allocation10], 1024
    $region81: #{tpu_custom_call.1} parent=1 // pred_fallthru
      _
    // Predicated region
    $region82: #{tpu_custom_call.1} parent=1 // pred_check
      _
    $region83: #{tpu_custom_call.1} parent=1 // pred_check_branch
      %152 = sbr.rel (0) target = $region85
    $region84: #{tpu_custom_call.1} parent=1 // pred_region
      %154 = dma.done [#allocation10], 1024
    $region85: #{tpu_custom_call.1} parent=1 // pred_fallthru
      _
    // Predicated region
    $region86: #{tpu_custom_call.1} parent=1 // pred_check
      _
    $region87: #{tpu_custom_call.1} parent=1 // pred_check_branch
      %156 = sbr.rel (0) target = $region89
    $region88: #{tpu_custom_call.1} parent=1 // pred_region
      %158 = dma.done [#allocation13], 1024
    $region89: #{tpu_custom_call.1} parent=1 // pred_fallthru
      _
    // Predicated region
    $region90: #{tpu_custom_call.1} parent=1 // pred_check
      _
    $region91: #{tpu_custom_call.1} parent=1 // pred_check_branch
      %160 = sbr.rel (0) target = $region93
    $region92: #{tpu_custom_call.1} parent=1 // pred_region
      %162 = dma.done [#allocation13], 1024
    $region93: #{tpu_custom_call.1} parent=1 // pred_fallthru
      _
    %v163 = vld [vmem:[#allocation3] sm:$0xf]
    %v164 = vld [vmem:[#allocation3 + $0x4] sm:$0xf]
    %v165 = vld [vmem:[#allocation3 + $0x8] sm:$0xf]
    %v166 = vld [vmem:[#allocation3 + $0xc] sm:$0xf]
    %v167 = vld [vmem:[#allocation3 + $0x10] sm:$0xf]
    %v168 = vld [vmem:[#allocation3 + $0x14] sm:$0xf]
    %v169 = vld [vmem:[#allocation3 + $0x18] sm:$0xf]
    %v170 = vld [vmem:[#allocation3 + $0x1c] sm:$0xf]
    %v171 = vld [vmem:[#allocation3 + $0x20] sm:$0xf]
    %v172 = vld [vmem:[#allocation3 + $0x24] sm:$0xf]
    %v173 = vld [vmem:[#allocation3 + $0x28] sm:$0xf]
    %v174 = vld [vmem:[#allocation3 + $0x2c] sm:$0xf]
    %v175 = vld [vmem:[#allocation3 + $0x30] sm:$0xf]
    %v176 = vld [vmem:[#allocation3 + $0x34] sm:$0xf]
    %v177 = vld [vmem:[#allocation3 + $0x38] sm:$0xf]
    %v178 = vld [vmem:[#allocation3 + $0x3c] sm:$0xf]
    %v179 = vld [vmem:[#allocation6] sm:$0xf]
    %v180 = vld [vmem:[#allocation6 + $0x4] sm:$0xf]
    %v181 = vld [vmem:[#allocation6 + $0x8] sm:$0xf]
    %v182 = vld [vmem:[#allocation6 + $0xc] sm:$0xf]
    %v183 = vld [vmem:[#allocation6 + $0x10] sm:$0xf]
    %v184 = vld [vmem:[#allocation6 + $0x14] sm:$0xf]
    %v185 = vld [vmem:[#allocation6 + $0x18] sm:$0xf]
    %v186 = vld [vmem:[#allocation6 + $0x1c] sm:$0xf]
    %v187 = vld [vmem:[#allocation6 + $0x20] sm:$0xf]
    %v188 = vld [vmem:[#allocation6 + $0x24] sm:$0xf]
    %v189 = vld [vmem:[#allocation6 + $0x28] sm:$0xf]
    %v190 = vld [vmem:[#allocation6 + $0x2c] sm:$0xf]
    %v191 = vld [vmem:[#allocation6 + $0x30] sm:$0xf]
    %v192 = vld [vmem:[#allocation6 + $0x34] sm:$0xf]
    %v193 = vld [vmem:[#allocation6 + $0x38] sm:$0xf]
    %v194 = vld [vmem:[#allocation6 + $0x3c] sm:$0xf]
    %v211 = vunpack.c.l.b16 %v163
    %v212 = vunpack.c.l.b16 %v164
    %v213 = vunpack.c.l.b16 %v165
    %v214 = vunpack.c.l.b16 %v166
    %v215 = vunpack.c.l.b16 %v167
    %v216 = vunpack.c.l.b16 %v168
    %v217 = vunpack.c.l.b16 %v169
    %v218 = vunpack.c.l.b16 %v170
    %v219 = vunpack.c.l.b16 %v171
    %v220 = vunpack.c.l.b16 %v172
    %v221 = vunpack.c.l.b16 %v173
    %v222 = vunpack.c.l.b16 %v174
    %v223 = vunpack.c.l.b16 %v175
    %v224 = vunpack.c.l.b16 %v176
    %v225 = vunpack.c.l.b16 %v177
    %v226 = vunpack.c.l.b16 %v178
    %v227 = vpack.c.b16 %v212, %v211
    %v228 = vpack.c.b16 %v214, %v213
    %v229 = vpack.c.b16 %v216, %v215
    %v230 = vpack.c.b16 %v218, %v217
    %v231 = vpack.c.b16 %v220, %v219
    %v232 = vpack.c.b16 %v222, %v221
    %v233 = vpack.c.b16 %v224, %v223
    %v234 = vpack.c.b16 %v226, %v225
    %v259 = vunpack.c.l.b16 %v179
    %v260 = vunpack.c.l.b16 %v180
    %v261 = vunpack.c.l.b16 %v181
    %v262 = vunpack.c.l.b16 %v182
    %v263 = vunpack.c.l.b16 %v183
    %v264 = vunpack.c.l.b16 %v184
    %v265 = vunpack.c.l.b16 %v185
    %v266 = vunpack.c.l.b16 %v186
    %v267 = vunpack.c.l.b16 %v187
    %v268 = vunpack.c.l.b16 %v188
    %v269 = vunpack.c.l.b16 %v189
    %v270 = vunpack.c.l.b16 %v190
    %v271 = vunpack.c.l.b16 %v191
    %v272 = vunpack.c.l.b16 %v192
    %v273 = vunpack.c.l.b16 %v193
    %v274 = vunpack.c.l.b16 %v194
    %v275 = vpack.c.b16 %v260, %v259
    %v276 = vpack.c.b16 %v262, %v261
    %v277 = vpack.c.b16 %v264, %v263
    %v278 = vpack.c.b16 %v266, %v265
    %v279 = vpack.c.b16 %v268, %v267
    %v280 = vpack.c.b16 %v270, %v269
    %v281 = vpack.c.b16 %v272, %v271
    %v282 = vpack.c.b16 %v274, %v273
    %291 = vmatpush.bf16.msra.mxu0 %v282
    %292 = vmatpush.bf16.msra.mxu0 %v281
    %293 = vmatpush.bf16.msra.mxu0 %v280
    %294 = vmatpush.bf16.msra.mxu0 %v279
    %295 = vmatpush.bf16.msra.mxu0 %v278
    %296 = vmatpush.bf16.msra.mxu0 %v277
    %297 = vmatpush.bf16.msra.mxu0 %v276
    %298 = vmatpush.bf16.msra.mxu0 %v275
    %299 = vmatmul.bf16.gmra.mxu0 %v227
    %v300 = vpop.f32.mrf.mxu0
    %v301 = vadd.f32 0.0, %v300
    %v302 = vpop.f32.mrf.mxu0
    %v303 = vadd.f32 0.0, %v302
    %304 = vmatmul.bf16.gmra.mxu0 %v228
    %v305 = vpop.f32.mrf.mxu0
    %v306 = vadd.f32 0.0, %v305
    %v307 = vpop.f32.mrf.mxu0
    %v308 = vadd.f32 0.0, %v307
    %309 = vmatmul.bf16.gmra.mxu0 %v229
    %v310 = vpop.f32.mrf.mxu0
    %v311 = vadd.f32 0.0, %v310
    %v312 = vpop.f32.mrf.mxu0
    %v313 = vadd.f32 0.0, %v312
    %314 = vmatmul.bf16.gmra.mxu0 %v230
    %v315 = vpop.f32.mrf.mxu0
    %v316 = vadd.f32 0.0, %v315
    %v317 = vpop.f32.mrf.mxu0
    %v318 = vadd.f32 0.0, %v317
    %319 = vmatmul.bf16.gmra.mxu0 %v231
    %v320 = vpop.f32.mrf.mxu0
    %v321 = vadd.f32 0.0, %v320
    %v322 = vpop.f32.mrf.mxu0
    %v323 = vadd.f32 0.0, %v322
    %324 = vmatmul.bf16.gmra.mxu0 %v232
    %v325 = vpop.f32.mrf.mxu0
    %v326 = vadd.f32 0.0, %v325
    %v327 = vpop.f32.mrf.mxu0
    %v328 = vadd.f32 0.0, %v327
    %329 = vmatmul.bf16.gmra.mxu0 %v233
    %v330 = vpop.f32.mrf.mxu0
    %v331 = vadd.f32 0.0, %v330
    %v332 = vpop.f32.mrf.mxu0
    %v333 = vadd.f32 0.0, %v332
    %334 = vmatmul.bf16.gmra.mxu0 %v234
    %v335 = vpop.f32.mrf.mxu0
    %v336 = vadd.f32 0.0, %v335
    %v337 = vpop.f32.mrf.mxu0
    %v338 = vadd.f32 0.0, %v337
    %339 = vdwg.mxu0
    %v340 = vld [vmem:[%s2] sm:$0x1]
    %v341 = vld [vmem:[%s3] sm:$0x1]
    %v342 = vadd.f32 %v301, %v303
    %v343 = vadd.f32 %v342, %v306
    %v344 = vadd.f32 %v343, %v308
    %v345 = vadd.f32 %v344, %v311
    %v346 = vadd.f32 %v345, %v313
    %v347 = vadd.f32 %v346, %v316
    %v348 = vadd.f32 %v347, %v318
    %v349 = vadd.f32 %v348, %v321
    %v350 = vadd.f32 %v349, %v323
    %v351 = vadd.f32 %v350, %v326
    %v352 = vadd.f32 %v351, %v328
    %v353 = vadd.f32 %v352, %v331
    %v354 = vadd.f32 %v353, %v333
    %v355 = vadd.f32 %v354, %v336
    %v356 = vadd.f32 %v355, %v338
    %v357 = vrot.slane %v356, 4
    %v358 = vadd.f32 %v356, %v357
    %v359 = vrot.slane %v358, 2
    %v360 = vadd.f32 %v358, %v359
    %v361 = vrot.slane %v360, 1
    %v362 = vadd.f32 %v360, %v361
    %v363 = vmul.f32 %v362, 0.0078125
    %v364 = vmul.f32 %v301, %v301
    %v365 = vmul.f32 %v303, %v303
    %v366 = vmul.f32 %v306, %v306
    %v367 = vmul.f32 %v308, %v308
    %v368 = vmul.f32 %v311, %v311
    %v369 = vmul.f32 %v313, %v313
    %v370 = vmul.f32 %v316, %v316
    %v371 = vmul.f32 %v318, %v318
    %v372 = vmul.f32 %v321, %v321
    %v373 = vmul.f32 %v323, %v323
    %v374 = vmul.f32 %v326, %v326
    %v375 = vmul.f32 %v328, %v328
    %v376 = vmul.f32 %v331, %v331
    %v377 = vmul.f32 %v333, %v333
    %v378 = vmul.f32 %v336, %v336
    %v379 = vmul.f32 %v338, %v338
    %v380 = vadd.f32 %v364, %v365
    %v381 = vadd.f32 %v380, %v366
    %v382 = vadd.f32 %v381, %v367
    %v383 = vadd.f32 %v382, %v368
    %v384 = vadd.f32 %v383, %v369
    %v385 = vadd.f32 %v384, %v370
    %v386 = vadd.f32 %v385, %v371
    %v387 = vadd.f32 %v386, %v372
    %v388 = vadd.f32 %v387, %v373
    %v389 = vadd.f32 %v388, %v374
    %v390 = vadd.f32 %v389, %v375
    %v391 = vadd.f32 %v390, %v376
    %v392 = vadd.f32 %v391, %v377
    %v393 = vadd.f32 %v392, %v378
    %v394 = vadd.f32 %v393, %v379
    %v395 = vrot.slane %v394, 4
    %v396 = vadd.f32 %v394, %v395
    %v397 = vrot.slane %v396, 2
    %v398 = vadd.f32 %v396, %v397
    %v399 = vrot.slane %v398, 1
    %v400 = vadd.f32 %v398, %v399
    %v401 = vmul.f32 %v400, 0.0078125
    %v402 = vmul.f32 %v363, %v363
    %v403 = vsub.f32 %v401, %v402
    %v404 = vadd.f32 %v403, 1e-05
    %v405 = vrsqrt.pop %v404
    %v406 = vmul.f32 %v405, %v404
    %v407 = vmul.f32 %v406, %v405
    %v408 = vmul.f32 0.5, %v407
    %v409 = vsub.f32 1.5, %v408
    %v410 = vmul.f32 %v405, %v409
    %vm411 = vweird.f32 %v404
    %vm412 = vweird.f32 %v405
    %vm413 = vmor %vm411, %vm412
    %v414 = vsel %vm413, %v405, %v410
    %v415 = vmul.f32 %v340, %v414
    %v417 = vperm.slane %v415, 0
    %v419 = vmul.f32 %v301, %v417
    %v420 = vmul.f32 %v303, %v417
    %v421 = vmul.f32 %v306, %v417
    %v422 = vmul.f32 %v308, %v417
    %v423 = vmul.f32 %v311, %v417
    %v424 = vmul.f32 %v313, %v417
    %v425 = vmul.f32 %v316, %v417
    %v426 = vmul.f32 %v318, %v417
    %v427 = vmul.f32 %v321, %v417
    %v428 = vmul.f32 %v323, %v417
    %v429 = vmul.f32 %v326, %v417
    %v430 = vmul.f32 %v328, %v417
    %v431 = vmul.f32 %v331, %v417
    %v432 = vmul.f32 %v333, %v417
    %v433 = vmul.f32 %v336, %v417
    %v434 = vmul.f32 %v338, %v417
    %v435 = vmul.f32 %v363, %v415
    %v436 = vsub.f32 %v341, %v435
    %v438 = vperm.slane %v436, 0
    %v440 = vadd.f32 %v419, %v438
    %v441 = vadd.f32 %v420, %v438
    %v442 = vadd.f32 %v421, %v438
    %v443 = vadd.f32 %v422, %v438
    %v444 = vadd.f32 %v423, %v438
    %v445 = vadd.f32 %v424, %v438
    %v446 = vadd.f32 %v425, %v438
    %v447 = vadd.f32 %v426, %v438
    %v448 = vadd.f32 %v427, %v438
    %v449 = vadd.f32 %v428, %v438
    %v450 = vadd.f32 %v429, %v438
    %v451 = vadd.f32 %v430, %v438
    %v452 = vadd.f32 %v431, %v438
    %v453 = vadd.f32 %v432, %v438
    %v454 = vadd.f32 %v433, %v438
    %v455 = vadd.f32 %v434, %v438
    %v456 = vmax.f32 %v440, 0.0
    %v457 = vmax.f32 %v441, 0.0
    %v458 = vmax.f32 %v442, 0.0
    %v459 = vmax.f32 %v443, 0.0
    %v460 = vmax.f32 %v444, 0.0
    %v461 = vmax.f32 %v445, 0.0
    %v462 = vmax.f32 %v446, 0.0
    %v463 = vmax.f32 %v447, 0.0
    %v464 = vmax.f32 %v448, 0.0
    %v465 = vmax.f32 %v449, 0.0
    %v466 = vmax.f32 %v450, 0.0
    %v467 = vmax.f32 %v451, 0.0
    %v468 = vmax.f32 %v452, 0.0
    %v469 = vmax.f32 %v453, 0.0
    %v470 = vmax.f32 %v454, 0.0
    %v471 = vmax.f32 %v455, 0.0
    %472 = vst [vmem:[#allocation2] sm:$0xff] 0.0
    %473 = vst [vmem:[#allocation2 + $0x8] sm:$0x3] 0.0
    %474 = vst [vmem:[#allocation2 + $0x10] sm:$0xff] 0.0
    %475 = vst [vmem:[#allocation2 + $0x18] sm:$0x3] 0.0
    %476 = vst [vmem:[#allocation2 + $0x20] sm:$0xff] 0.0
    %477 = vst [vmem:[#allocation2 + $0x28] sm:$0x3] 0.0
    %478 = vst [vmem:[#allocation2 + $0x30] sm:$0xff] 0.0
    %479 = vst [vmem:[#allocation2 + $0x38] sm:$0x3] 0.0
    %480 = vst [vmem:[#allocation2 + $0x40] sm:$0xff] 0.0
    %481 = vst [vmem:[#allocation2 + $0x48] sm:$0x3] 0.0
    %482 = vst [vmem:[#allocation2 + $0x50] sm:$0xff] 0.0
    %483 = vst [vmem:[#allocation2 + $0x58] sm:$0x3] 0.0
    %484 = vst [vmem:[#allocation2 + $0x60] sm:$0xff] 0.0
    %485 = vst [vmem:[#allocation2 + $0x68] sm:$0x3] 0.0
    %486 = vst [vmem:[#allocation2 + $0x70] sm:$0xff] 0.0
    %487 = vst [vmem:[#allocation2 + $0x78] sm:$0x3] 0.0
    %488 = vst [vmem:[#allocation2 + $0x80] sm:$0xff] 0.0
    %489 = vst [vmem:[#allocation2 + $0x88] sm:$0x3] 0.0
    %490 = vst [vmem:[#allocation2 + $0x90] sm:$0xff] 0.0
    %491 = vst [vmem:[#allocation2 + $0x98] sm:$0x3] 0.0
    %492 = vst [vmem:[#allocation2 + $0xa0] sm:$0xff] 0.0
    %493 = vst [vmem:[#allocation2 + $0xa8] sm:$0x3] 0.0
    %494 = vst [vmem:[#allocation2 + $0xb0] sm:$0xff] 0.0
    %495 = vst [vmem:[#allocation2 + $0xb8] sm:$0x3] 0.0
    %496 = vst [vmem:[#allocation2 + $0xc0] sm:$0xff] 0.0
    %497 = vst [vmem:[#allocation2 + $0xc8] sm:$0x3] 0.0
    %498 = vst [vmem:[#allocation2 + $0xd0] sm:$0xff] 0.0
    %499 = vst [vmem:[#allocation2 + $0xd8] sm:$0x3] 0.0
    %500 = vst [vmem:[#allocation2 + $0xe0] sm:$0xff] 0.0
    %501 = vst [vmem:[#allocation2 + $0xe8] sm:$0x3] 0.0
    %502 = vst [vmem:[#allocation2 + $0xf0] sm:$0xff] 0.0
    %503 = vst [vmem:[#allocation2 + $0xf8] sm:$0x3] 0.0
    %504 = vst [vmem:[#allocation2 + $0x100] sm:$0xff] 0.0
    %505 = vst [vmem:[#allocation2 + $0x108] sm:$0x3] 0.0
    %506 = vst [vmem:[#allocation2 + $0x110] sm:$0xff] 0.0
    %507 = vst [vmem:[#allocation2 + $0x118] sm:$0x3] 0.0
    %508 = vst [vmem:[#allocation2 + $0x120] sm:$0xff] 0.0
    %509 = vst [vmem:[#allocation2 + $0x128] sm:$0x3] 0.0
    %510 = vst [vmem:[#allocation2 + $0x130] sm:$0xff] 0.0
    %511 = vst [vmem:[#allocation2 + $0x138] sm:$0x3] 0.0
    %s512 = scalar_lea.vmem [#allocation2], 16
    %513 = vst [vmem:[%s512 + $0x1] sm:$0xff] %v456
    %514 = vst [vmem:[%s512 + $0x11] sm:$0xff] %v457
    %515 = vst [vmem:[%s512 + $0x21] sm:$0xff] %v458
    %516 = vst [vmem:[%s512 + $0x31] sm:$0xff] %v459
    %517 = vst [vmem:[%s512 + $0x41] sm:$0xff] %v460
    %518 = vst [vmem:[%s512 + $0x51] sm:$0xff] %v461
    %519 = vst [vmem:[%s512 + $0x61] sm:$0xff] %v462
    %520 = vst [vmem:[%s512 + $0x71] sm:$0xff] %v463
    %521 = vst [vmem:[%s512 + $0xa1] sm:$0xff] %v464
    %522 = vst [vmem:[%s512 + $0xb1] sm:$0xff] %v465
    %523 = vst [vmem:[%s512 + $0xc1] sm:$0xff] %v466
    %524 = vst [vmem:[%s512 + $0xd1] sm:$0xff] %v467
    %525 = vst [vmem:[%s512 + $0xe1] sm:$0xff] %v468
    %526 = vst [vmem:[%s512 + $0xf1] sm:$0xff] %v469
    %527 = vst [vmem:[%s512 + $0x101] sm:$0xff] %v470
    %528 = vst [vmem:[%s512 + $0x111] sm:$0xff] %v471
    %v529 = vld [vmem:[#allocation2] sm:$0xff]
    %v530 = vld [vmem:[#allocation2 + $0x10] sm:$0xff]
    %v531 = vld [vmem:[#allocation2 + $0x20] sm:$0xff]
    %v532 = vld [vmem:[#allocation2 + $0x30] sm:$0xff]
    %v533 = vld [vmem:[#allocation2 + $0x40] sm:$0xff]
    %v534 = vld [vmem:[#allocation2 + $0x50] sm:$0xff]
    %v535 = vld [vmem:[#allocation2 + $0x60] sm:$0xff]
    %v536 = vld [vmem:[#allocation2 + $0x70] sm:$0xff]
    %v537 = vld [vmem:[#allocation2 + $0xa0] sm:$0xff]
    %v538 = vld [vmem:[#allocation2 + $0xb0] sm:$0xff]
    %v539 = vld [vmem:[#allocation2 + $0xc0] sm:$0xff]
    %v540 = vld [vmem:[#allocation2 + $0xd0] sm:$0xff]
    %v541 = vld [vmem:[#allocation2 + $0xe0] sm:$0xff]
    %v542 = vld [vmem:[#allocation2 + $0xf0] sm:$0xff]
    %v543 = vld [vmem:[#allocation2 + $0x100] sm:$0xff]
    %v544 = vld [vmem:[#allocation2 + $0x110] sm:$0xff]
    %v545 = vpack.c.bf16 %v529, %v529
    %v546 = vpack.c.bf16 %v530, %v530
    %v547 = vpack.c.bf16 %v531, %v531
    %v548 = vpack.c.bf16 %v532, %v532
    %v549 = vpack.c.bf16 %v533, %v533
    %v550 = vpack.c.bf16 %v534, %v534
    %v551 = vpack.c.bf16 %v535, %v535
    %v552 = vpack.c.bf16 %v536, %v536
    %v553 = vpack.c.bf16 %v537, %v537
    %v554 = vpack.c.bf16 %v538, %v538
    %v555 = vpack.c.bf16 %v539, %v539
    %v556 = vpack.c.bf16 %v540, %v540
    %v557 = vpack.c.bf16 %v541, %v541
    %v558 = vpack.c.bf16 %v542, %v542
    %v559 = vpack.c.bf16 %v543, %v543
    %v560 = vpack.c.bf16 %v544, %v544
    %v561 = vld [vmem:[#allocation2 + $0x1] sm:$0xff]
    %v562 = vld [vmem:[#allocation2 + $0x11] sm:$0xff]
    %v563 = vld [vmem:[#allocation2 + $0x21] sm:$0xff]
    %v564 = vld [vmem:[#allocation2 + $0x31] sm:$0xff]
    %v565 = vld [vmem:[#allocation2 + $0x41] sm:$0xff]
    %v566 = vld [vmem:[#allocation2 + $0x51] sm:$0xff]
    %v567 = vld [vmem:[#allocation2 + $0x61] sm:$0xff]
    %v568 = vld [vmem:[#allocation2 + $0x71] sm:$0xff]
    %v569 = vld [vmem:[#allocation2 + $0xa1] sm:$0xff]
    %v570 = vld [vmem:[#allocation2 + $0xb1] sm:$0xff]
    %v571 = vld [vmem:[#allocation2 + $0xc1] sm:$0xff]
    %v572 = vld [vmem:[#allocation2 + $0xd1] sm:$0xff]
    %v573 = vld [vmem:[#allocation2 + $0xe1] sm:$0xff]
    %v574 = vld [vmem:[#allocation2 + $0xf1] sm:$0xff]
    %v575 = vld [vmem:[#allocation2 + $0x101] sm:$0xff]
    %v576 = vld [vmem:[#allocation2 + $0x111] sm:$0xff]
    %v577 = vpack.c.bf16 %v561, %v561
    %v578 = vpack.c.bf16 %v562, %v562
    %v579 = vpack.c.bf16 %v563, %v563
    %v580 = vpack.c.bf16 %v564, %v564
    %v581 = vpack.c.bf16 %v565, %v565
    %v582 = vpack.c.bf16 %v566, %v566
    %v583 = vpack.c.bf16 %v567, %v567
    %v584 = vpack.c.bf16 %v568, %v568
    %v585 = vpack.c.bf16 %v569, %v569
    %v586 = vpack.c.bf16 %v570, %v570
    %v587 = vpack.c.bf16 %v571, %v571
    %v588 = vpack.c.bf16 %v572, %v572
    %v589 = vpack.c.bf16 %v573, %v573
    %v590 = vpack.c.bf16 %v574, %v574
    %v591 = vpack.c.bf16 %v575, %v575
    %v592 = vpack.c.bf16 %v576, %v576
    %v593 = vld [vmem:[#allocation2 + $0x2] sm:$0xff]
    %v594 = vld [vmem:[#allocation2 + $0x12] sm:$0xff]
    %v595 = vld [vmem:[#allocation2 + $0x22] sm:$0xff]
    %v596 = vld [vmem:[#allocation2 + $0x32] sm:$0xff]
    %v597 = vld [vmem:[#allocation2 + $0x42] sm:$0xff]
    %v598 = vld [vmem:[#allocation2 + $0x52] sm:$0xff]
    %v599 = vld [vmem:[#allocation2 + $0x62] sm:$0xff]
    %v600 = vld [vmem:[#allocation2 + $0x72] sm:$0xff]
    %v601 = vld [vmem:[#allocation2 + $0xa2] sm:$0xff]
    %v602 = vld [vmem:[#allocation2 + $0xb2] sm:$0xff]
    %v603 = vld [vmem:[#allocation2 + $0xc2] sm:$0xff]
    %v604 = vld [vmem:[#allocation2 + $0xd2] sm:$0xff]
    %v605 = vld [vmem:[#allocation2 + $0xe2] sm:$0xff]
    %v606 = vld [vmem:[#allocation2 + $0xf2] sm:$0xff]
    %v607 = vld [vmem:[#allocation2 + $0x102] sm:$0xff]
    %v608 = vld [vmem:[#allocation2 + $0x112] sm:$0xff]
    %v609 = vpack.c.bf16 %v593, %v593
    %v610 = vpack.c.bf16 %v594, %v594
    %v611 = vpack.c.bf16 %v595, %v595
    %v612 = vpack.c.bf16 %v596, %v596
    %v613 = vpack.c.bf16 %v597, %v597
    %v614 = vpack.c.bf16 %v598, %v598
    %v615 = vpack.c.bf16 %v599, %v599
    %v616 = vpack.c.bf16 %v600, %v600
    %v617 = vpack.c.bf16 %v601, %v601
    %v618 = vpack.c.bf16 %v602, %v602
    %v619 = vpack.c.bf16 %v603, %v603
    %v620 = vpack.c.bf16 %v604, %v604
    %v621 = vpack.c.bf16 %v605, %v605
    %v622 = vpack.c.bf16 %v606, %v606
    %v623 = vpack.c.bf16 %v607, %v607
    %v624 = vpack.c.bf16 %v608, %v608
    %v625 = vld [vmem:[%s512] sm:$0xff]
    %v626 = vld [vmem:[%s512 + $0x10] sm:$0xff]
    %v627 = vld [vmem:[%s512 + $0x20] sm:$0xff]
    %v628 = vld [vmem:[%s512 + $0x30] sm:$0xff]
    %v629 = vld [vmem:[%s512 + $0x40] sm:$0xff]
    %v630 = vld [vmem:[%s512 + $0x50] sm:$0xff]
    %v631 = vld [vmem:[%s512 + $0x60] sm:$0xff]
    %v632 = vld [vmem:[%s512 + $0x70] sm:$0xff]
    %v633 = vld [vmem:[%s512 + $0xa0] sm:$0xff]
    %v634 = vld [vmem:[%s512 + $0xb0] sm:$0xff]
    %v635 = vld [vmem:[%s512 + $0xc0] sm:$0xff]
    %v636 = vld [vmem:[%s512 + $0xd0] sm:$0xff]
    %v637 = vld [vmem:[%s512 + $0xe0] sm:$0xff]
    %v638 = vld [vmem:[%s512 + $0xf0] sm:$0xff]
    %v639 = vld [vmem:[%s512 + $0x100] sm:$0xff]
    %v640 = vld [vmem:[%s512 + $0x110] sm:$0xff]
    %v641 = vpack.c.bf16 %v625, %v625
    %v642 = vpack.c.bf16 %v626, %v626
    %v643 = vpack.c.bf16 %v627, %v627
    %v644 = vpack.c.bf16 %v628, %v628
    %v645 = vpack.c.bf16 %v629, %v629
    %v646 = vpack.c.bf16 %v630, %v630
    %v647 = vpack.c.bf16 %v631, %v631
    %v648 = vpack.c.bf16 %v632, %v632
    %v649 = vpack.c.bf16 %v633, %v633
    %v650 = vpack.c.bf16 %v634, %v634
    %v651 = vpack.c.bf16 %v635, %v635
    %v652 = vpack.c.bf16 %v636, %v636
    %v653 = vpack.c.bf16 %v637, %v637
    %v654 = vpack.c.bf16 %v638, %v638
    %v655 = vpack.c.bf16 %v639, %v639
    %v656 = vpack.c.bf16 %v640, %v640
    %v657 = vld [vmem:[%s512 + $0x1] sm:$0xff]
    %v658 = vld [vmem:[%s512 + $0x11] sm:$0xff]
    %v659 = vld [vmem:[%s512 + $0x21] sm:$0xff]
    %v660 = vld [vmem:[%s512 + $0x31] sm:$0xff]
    %v661 = vld [vmem:[%s512 + $0x41] sm:$0xff]
    %v662 = vld [vmem:[%s512 + $0x51] sm:$0xff]
    %v663 = vld [vmem:[%s512 + $0x61] sm:$0xff]
    %v664 = vld [vmem:[%s512 + $0x71] sm:$0xff]
    %v665 = vld [vmem:[%s512 + $0xa1] sm:$0xff]
    %v666 = vld [vmem:[%s512 + $0xb1] sm:$0xff]
    %v667 = vld [vmem:[%s512 + $0xc1] sm:$0xff]
    %v668 = vld [vmem:[%s512 + $0xd1] sm:$0xff]
    %v669 = vld [vmem:[%s512 + $0xe1] sm:$0xff]
    %v670 = vld [vmem:[%s512 + $0xf1] sm:$0xff]
    %v671 = vld [vmem:[%s512 + $0x101] sm:$0xff]
    %v672 = vld [vmem:[%s512 + $0x111] sm:$0xff]
    %v673 = vpack.c.bf16 %v657, %v657
    %v674 = vpack.c.bf16 %v658, %v658
    %v675 = vpack.c.bf16 %v659, %v659
    %v676 = vpack.c.bf16 %v660, %v660
    %v677 = vpack.c.bf16 %v661, %v661
    %v678 = vpack.c.bf16 %v662, %v662
    %v679 = vpack.c.bf16 %v663, %v663
    %v680 = vpack.c.bf16 %v664, %v664
    %v681 = vpack.c.bf16 %v665, %v665
    %v682 = vpack.c.bf16 %v666, %v666
    %v683 = vpack.c.bf16 %v667, %v667
    %v684 = vpack.c.bf16 %v668, %v668
    %v685 = vpack.c.bf16 %v669, %v669
    %v686 = vpack.c.bf16 %v670, %v670
    %v687 = vpack.c.bf16 %v671, %v671
    %v688 = vpack.c.bf16 %v672, %v672
    %v689 = vld [vmem:[%s512 + $0x2] sm:$0xff]
    %v690 = vld [vmem:[%s512 + $0x12] sm:$0xff]
    %v691 = vld [vmem:[%s512 + $0x22] sm:$0xff]
    %v692 = vld [vmem:[%s512 + $0x32] sm:$0xff]
    %v693 = vld [vmem:[%s512 + $0x42] sm:$0xff]
    %v694 = vld [vmem:[%s512 + $0x52] sm:$0xff]
    %v695 = vld [vmem:[%s512 + $0x62] sm:$0xff]
    %v696 = vld [vmem:[%s512 + $0x72] sm:$0xff]
    %v697 = vld [vmem:[%s512 + $0xa2] sm:$0xff]
    %v698 = vld [vmem:[%s512 + $0xb2] sm:$0xff]
    %v699 = vld [vmem:[%s512 + $0xc2] sm:$0xff]
    %v700 = vld [vmem:[%s512 + $0xd2] sm:$0xff]
    %v701 = vld [vmem:[%s512 + $0xe2] sm:$0xff]
    %v702 = vld [vmem:[%s512 + $0xf2] sm:$0xff]
    %v703 = vld [vmem:[%s512 + $0x102] sm:$0xff]
    %v704 = vld [vmem:[%s512 + $0x112] sm:$0xff]
    %v705 = vpack.c.bf16 %v689, %v689
    %v706 = vpack.c.bf16 %v690, %v690
    %v707 = vpack.c.bf16 %v691, %v691
    %v708 = vpack.c.bf16 %v692, %v692
    %v709 = vpack.c.bf16 %v693, %v693
    %v710 = vpack.c.bf16 %v694, %v694
    %v711 = vpack.c.bf16 %v695, %v695
    %v712 = vpack.c.bf16 %v696, %v696
    %v713 = vpack.c.bf16 %v697, %v697
    %v714 = vpack.c.bf16 %v698, %v698
    %v715 = vpack.c.bf16 %v699, %v699
    %v716 = vpack.c.bf16 %v700, %v700
    %v717 = vpack.c.bf16 %v701, %v701
    %v718 = vpack.c.bf16 %v702, %v702
    %v719 = vpack.c.bf16 %v703, %v703
    %v720 = vpack.c.bf16 %v704, %v704
    %s721 = scalar_lea.vmem [#allocation2], 32
    %v722 = vld [vmem:[%s721] sm:$0xff]
    %v723 = vld [vmem:[%s721 + $0x10] sm:$0xff]
    %v724 = vld [vmem:[%s721 + $0x20] sm:$0xff]
    %v725 = vld [vmem:[%s721 + $0x30] sm:$0xff]
    %v726 = vld [vmem:[%s721 + $0x40] sm:$0xff]
    %v727 = vld [vmem:[%s721 + $0x50] sm:$0xff]
    %v728 = vld [vmem:[%s721 + $0x60] sm:$0xff]
    %v729 = vld [vmem:[%s721 + $0x70] sm:$0xff]
    %v730 = vld [vmem:[%s721 + $0xa0] sm:$0xff]
    %v731 = vld [vmem:[%s721 + $0xb0] sm:$0xff]
    %v732 = vld [vmem:[%s721 + $0xc0] sm:$0xff]
    %v733 = vld [vmem:[%s721 + $0xd0] sm:$0xff]
    %v734 = vld [vmem:[%s721 + $0xe0] sm:$0xff]
    %v735 = vld [vmem:[%s721 + $0xf0] sm:$0xff]
    %v736 = vld [vmem:[%s721 + $0x100] sm:$0xff]
    %v737 = vld [vmem:[%s721 + $0x110] sm:$0xff]
    %v738 = vpack.c.bf16 %v722, %v722
    %v739 = vpack.c.bf16 %v723, %v723
    %v740 = vpack.c.bf16 %v724, %v724
    %v741 = vpack.c.bf16 %v725, %v725
    %v742 = vpack.c.bf16 %v726, %v726
    %v743 = vpack.c.bf16 %v727, %v727
    %v744 = vpack.c.bf16 %v728, %v728
    %v745 = vpack.c.bf16 %v729, %v729
    %v746 = vpack.c.bf16 %v730, %v730
    %v747 = vpack.c.bf16 %v731, %v731
    %v748 = vpack.c.bf16 %v732, %v732
    %v749 = vpack.c.bf16 %v733, %v733
    %v750 = vpack.c.bf16 %v734, %v734
    %v751 = vpack.c.bf16 %v735, %v735
    %v752 = vpack.c.bf16 %v736, %v736
    %v753 = vpack.c.bf16 %v737, %v737
    %v754 = vld [vmem:[%s721 + $0x1] sm:$0xff]
    %v755 = vld [vmem:[%s721 + $0x11] sm:$0xff]
    %v756 = vld [vmem:[%s721 + $0x21] sm:$0xff]
    %v757 = vld [vmem:[%s721 + $0x31] sm:$0xff]
    %v758 = vld [vmem:[%s721 + $0x41] sm:$0xff]
    %v759 = vld [vmem:[%s721 + $0x51] sm:$0xff]
    %v760 = vld [vmem:[%s721 + $0x61] sm:$0xff]
    %v761 = vld [vmem:[%s721 + $0x71] sm:$0xff]
    %v762 = vld [vmem:[%s721 + $0xa1] sm:$0xff]
    %v763 = vld [vmem:[%s721 + $0xb1] sm:$0xff]
    %v764 = vld [vmem:[%s721 + $0xc1] sm:$0xff]
    %v765 = vld [vmem:[%s721 + $0xd1] sm:$0xff]
    %v766 = vld [vmem:[%s721 + $0xe1] sm:$0xff]
    %v767 = vld [vmem:[%s721 + $0xf1] sm:$0xff]
    %v768 = vld [vmem:[%s721 + $0x101] sm:$0xff]
    %v769 = vld [vmem:[%s721 + $0x111] sm:$0xff]
    %v770 = vpack.c.bf16 %v754, %v754
    %v771 = vpack.c.bf16 %v755, %v755
    %v772 = vpack.c.bf16 %v756, %v756
    %v773 = vpack.c.bf16 %v757, %v757
    %v774 = vpack.c.bf16 %v758, %v758
    %v775 = vpack.c.bf16 %v759, %v759
    %v776 = vpack.c.bf16 %v760, %v760
    %v777 = vpack.c.bf16 %v761, %v761
    %v778 = vpack.c.bf16 %v762, %v762
    %v779 = vpack.c.bf16 %v763, %v763
    %v780 = vpack.c.bf16 %v764, %v764
    %v781 = vpack.c.bf16 %v765, %v765
    %v782 = vpack.c.bf16 %v766, %v766
    %v783 = vpack.c.bf16 %v767, %v767
    %v784 = vpack.c.bf16 %v768, %v768
    %v785 = vpack.c.bf16 %v769, %v769
    %v786 = vld [vmem:[%s721 + $0x2] sm:$0xff]
    %v787 = vld [vmem:[%s721 + $0x12] sm:$0xff]
    %v788 = vld [vmem:[%s721 + $0x22] sm:$0xff]
    %v789 = vld [vmem:[%s721 + $0x32] sm:$0xff]
    %v790 = vld [vmem:[%s721 + $0x42] sm:$0xff]
    %v791 = vld [vmem:[%s721 + $0x52] sm:$0xff]
    %v792 = vld [vmem:[%s721 + $0x62] sm:$0xff]
    %v793 = vld [vmem:[%s721 + $0x72] sm:$0xff]
    %v794 = vld [vmem:[%s721 + $0xa2] sm:$0xff]
    %v795 = vld [vmem:[%s721 + $0xb2] sm:$0xff]
    %v796 = vld [vmem:[%s721 + $0xc2] sm:$0xff]
    %v797 = vld [vmem:[%s721 + $0xd2] sm:$0xff]
    %v798 = vld [vmem:[%s721 + $0xe2] sm:$0xff]
    %v799 = vld [vmem:[%s721 + $0xf2] sm:$0xff]
    %v800 = vld [vmem:[%s721 + $0x102] sm:$0xff]
    %v801 = vld [vmem:[%s721 + $0x112] sm:$0xff]
    %v802 = vpack.c.bf16 %v786, %v786
    %v803 = vpack.c.bf16 %v787, %v787
    %v804 = vpack.c.bf16 %v788, %v788
    %v805 = vpack.c.bf16 %v789, %v789
    %v806 = vpack.c.bf16 %v790, %v790
    %v807 = vpack.c.bf16 %v791, %v791
    %v808 = vpack.c.bf16 %v792, %v792
    %v809 = vpack.c.bf16 %v793, %v793
    %v810 = vpack.c.bf16 %v794, %v794
    %v811 = vpack.c.bf16 %v795, %v795
    %v812 = vpack.c.bf16 %v796, %v796
    %v813 = vpack.c.bf16 %v797, %v797
    %v814 = vpack.c.bf16 %v798, %v798
    %v815 = vpack.c.bf16 %v799, %v799
    %v816 = vpack.c.bf16 %v800, %v800
    %v817 = vpack.c.bf16 %v801, %v801
    %v834 = vunpack.c.l.b16 %v545
    %v835 = vunpack.c.l.b16 %v546
    %v836 = vunpack.c.l.b16 %v547
    %v837 = vunpack.c.l.b16 %v548
    %v838 = vunpack.c.l.b16 %v549
    %v839 = vunpack.c.l.b16 %v550
    %v840 = vunpack.c.l.b16 %v551
    %v841 = vunpack.c.l.b16 %v552
    %v842 = vunpack.c.l.b16 %v553
    %v843 = vunpack.c.l.b16 %v554
    %v844 = vunpack.c.l.b16 %v555
    %v845 = vunpack.c.l.b16 %v556
    %v846 = vunpack.c.l.b16 %v557
    %v847 = vunpack.c.l.b16 %v558
    %v848 = vunpack.c.l.b16 %v559
    %v849 = vunpack.c.l.b16 %v560
    %v850 = vpack.c.b16 %v835, %v834
    %v851 = vpack.c.b16 %v837, %v836
    %v852 = vpack.c.b16 %v839, %v838
    %v853 = vpack.c.b16 %v841, %v840
    %v854 = vpack.c.b16 %v843, %v842
    %v855 = vpack.c.b16 %v845, %v844
    %v856 = vpack.c.b16 %v847, %v846
    %v857 = vpack.c.b16 %v849, %v848
    %v882 = vunpack.c.l.b16 %v577
    %v883 = vunpack.c.l.b16 %v578
    %v884 = vunpack.c.l.b16 %v579
    %v885 = vunpack.c.l.b16 %v580
    %v886 = vunpack.c.l.b16 %v581
    %v887 = vunpack.c.l.b16 %v582
    %v888 = vunpack.c.l.b16 %v583
    %v889 = vunpack.c.l.b16 %v584
    %v890 = vunpack.c.l.b16 %v585
    %v891 = vunpack.c.l.b16 %v586
    %v892 = vunpack.c.l.b16 %v587
    %v893 = vunpack.c.l.b16 %v588
    %v894 = vunpack.c.l.b16 %v589
    %v895 = vunpack.c.l.b16 %v590
    %v896 = vunpack.c.l.b16 %v591
    %v897 = vunpack.c.l.b16 %v592
    %v898 = vpack.c.b16 %v883, %v882
    %v899 = vpack.c.b16 %v885, %v884
    %v900 = vpack.c.b16 %v887, %v886
    %v901 = vpack.c.b16 %v889, %v888
    %v902 = vpack.c.b16 %v891, %v890
    %v903 = vpack.c.b16 %v893, %v892
    %v904 = vpack.c.b16 %v895, %v894
    %v905 = vpack.c.b16 %v897, %v896
    %v930 = vunpack.c.l.b16 %v609
    %v931 = vunpack.c.l.b16 %v610
    %v932 = vunpack.c.l.b16 %v611
    %v933 = vunpack.c.l.b16 %v612
    %v934 = vunpack.c.l.b16 %v613
    %v935 = vunpack.c.l.b16 %v614
    %v936 = vunpack.c.l.b16 %v615
    %v937 = vunpack.c.l.b16 %v616
    %v938 = vunpack.c.l.b16 %v617
    %v939 = vunpack.c.l.b16 %v618
    %v940 = vunpack.c.l.b16 %v619
    %v941 = vunpack.c.l.b16 %v620
    %v942 = vunpack.c.l.b16 %v621
    %v943 = vunpack.c.l.b16 %v622
    %v944 = vunpack.c.l.b16 %v623
    %v945 = vunpack.c.l.b16 %v624
    %v946 = vpack.c.b16 %v931, %v930
    %v947 = vpack.c.b16 %v933, %v932
    %v948 = vpack.c.b16 %v935, %v934
    %v949 = vpack.c.b16 %v937, %v936
    %v950 = vpack.c.b16 %v939, %v938
    %v951 = vpack.c.b16 %v941, %v940
    %v952 = vpack.c.b16 %v943, %v942
    %v953 = vpack.c.b16 %v945, %v944
    %v978 = vunpack.c.l.b16 %v641
    %v979 = vunpack.c.l.b16 %v642
    %v980 = vunpack.c.l.b16 %v643
    %v981 = vunpack.c.l.b16 %v644
    %v982 = vunpack.c.l.b16 %v645
    %v983 = vunpack.c.l.b16 %v646
    %v984 = vunpack.c.l.b16 %v647
    %v985 = vunpack.c.l.b16 %v648
    %v986 = vunpack.c.l.b16 %v649
    %v987 = vunpack.c.l.b16 %v650
    %v988 = vunpack.c.l.b16 %v651
    %v989 = vunpack.c.l.b16 %v652
    %v990 = vunpack.c.l.b16 %v653
    %v991 = vunpack.c.l.b16 %v654
    %v992 = vunpack.c.l.b16 %v655
    %v993 = vunpack.c.l.b16 %v656
    %v994 = vpack.c.b16 %v979, %v978
    %v995 = vpack.c.b16 %v981, %v980
    %v996 = vpack.c.b16 %v983, %v982
    %v997 = vpack.c.b16 %v985, %v984
    %v998 = vpack.c.b16 %v987, %v986
    %v999 = vpack.c.b16 %v989, %v988
    %v1000 = vpack.c.b16 %v991, %v990
    %v1001 = vpack.c.b16 %v993, %v992
    %v1026 = vunpack.c.l.b16 %v673
    %v1027 = vunpack.c.l.b16 %v674
    %v1028 = vunpack.c.l.b16 %v675
    %v1029 = vunpack.c.l.b16 %v676
    %v1030 = vunpack.c.l.b16 %v677
    %v1031 = vunpack.c.l.b16 %v678
    %v1032 = vunpack.c.l.b16 %v679
    %v1033 = vunpack.c.l.b16 %v680
    %v1034 = vunpack.c.l.b16 %v681
    %v1035 = vunpack.c.l.b16 %v682
    %v1036 = vunpack.c.l.b16 %v683
    %v1037 = vunpack.c.l.b16 %v684
    %v1038 = vunpack.c.l.b16 %v685
    %v1039 = vunpack.c.l.b16 %v686
    %v1040 = vunpack.c.l.b16 %v687
    %v1041 = vunpack.c.l.b16 %v688
    %v1042 = vpack.c.b16 %v1027, %v1026
    %v1043 = vpack.c.b16 %v1029, %v1028
    %v1044 = vpack.c.b16 %v1031, %v1030
    %v1045 = vpack.c.b16 %v1033, %v1032
    %v1046 = vpack.c.b16 %v1035, %v1034
    %v1047 = vpack.c.b16 %v1037, %v1036
    %v1048 = vpack.c.b16 %v1039, %v1038
    %v1049 = vpack.c.b16 %v1041, %v1040
    %v1074 = vunpack.c.l.b16 %v705
    %v1075 = vunpack.c.l.b16 %v706
    %v1076 = vunpack.c.l.b16 %v707
    %v1077 = vunpack.c.l.b16 %v708
    %v1078 = vunpack.c.l.b16 %v709
    %v1079 = vunpack.c.l.b16 %v710
    %v1080 = vunpack.c.l.b16 %v711
    %v1081 = vunpack.c.l.b16 %v712
    %v1082 = vunpack.c.l.b16 %v713
    %v1083 = vunpack.c.l.b16 %v714
    %v1084 = vunpack.c.l.b16 %v715
    %v1085 = vunpack.c.l.b16 %v716
    %v1086 = vunpack.c.l.b16 %v717
    %v1087 = vunpack.c.l.b16 %v718
    %v1088 = vunpack.c.l.b16 %v719
    %v1089 = vunpack.c.l.b16 %v720
    %v1090 = vpack.c.b16 %v1075, %v1074
    %v1091 = vpack.c.b16 %v1077, %v1076
    %v1092 = vpack.c.b16 %v1079, %v1078
    %v1093 = vpack.c.b16 %v1081, %v1080
    %v1094 = vpack.c.b16 %v1083, %v1082
    %v1095 = vpack.c.b16 %v1085, %v1084
    %v1096 = vpack.c.b16 %v1087, %v1086
    %v1097 = vpack.c.b16 %v1089, %v1088
    %v1122 = vunpack.c.l.b16 %v738
    %v1123 = vunpack.c.l.b16 %v739
    %v1124 = vunpack.c.l.b16 %v740
    %v1125 = vunpack.c.l.b16 %v741
    %v1126 = vunpack.c.l.b16 %v742
    %v1127 = vunpack.c.l.b16 %v743
    %v1128 = vunpack.c.l.b16 %v744
    %v1129 = vunpack.c.l.b16 %v745
    %v1130 = vunpack.c.l.b16 %v746
    %v1131 = vunpack.c.l.b16 %v747
    %v1132 = vunpack.c.l.b16 %v748
    %v1133 = vunpack.c.l.b16 %v749
    %v1134 = vunpack.c.l.b16 %v750
    %v1135 = vunpack.c.l.b16 %v751
    %v1136 = vunpack.c.l.b16 %v752
    %v1137 = vunpack.c.l.b16 %v753
    %v1138 = vpack.c.b16 %v1123, %v1122
    %v1139 = vpack.c.b16 %v1125, %v1124
    %v1140 = vpack.c.b16 %v1127, %v1126
    %v1141 = vpack.c.b16 %v1129, %v1128
    %v1142 = vpack.c.b16 %v1131, %v1130
    %v1143 = vpack.c.b16 %v1133, %v1132
    %v1144 = vpack.c.b16 %v1135, %v1134
    %v1145 = vpack.c.b16 %v1137, %v1136
    %v1170 = vunpack.c.l.b16 %v770
    %v1171 = vunpack.c.l.b16 %v771
    %v1172 = vunpack.c.l.b16 %v772
    %v1173 = vunpack.c.l.b16 %v773
    %v1174 = vunpack.c.l.b16 %v774
    %v1175 = vunpack.c.l.b16 %v775
    %v1176 = vunpack.c.l.b16 %v776
    %v1177 = vunpack.c.l.b16 %v777
    %v1178 = vunpack.c.l.b16 %v778
    %v1179 = vunpack.c.l.b16 %v779
    %v1180 = vunpack.c.l.b16 %v780
    %v1181 = vunpack.c.l.b16 %v781
    %v1182 = vunpack.c.l.b16 %v782
    %v1183 = vunpack.c.l.b16 %v783
    %v1184 = vunpack.c.l.b16 %v784
    %v1185 = vunpack.c.l.b16 %v785
    %v1186 = vpack.c.b16 %v1171, %v1170
    %v1187 = vpack.c.b16 %v1173, %v1172
    %v1188 = vpack.c.b16 %v1175, %v1174
    %v1189 = vpack.c.b16 %v1177, %v1176
    %v1190 = vpack.c.b16 %v1179, %v1178
    %v1191 = vpack.c.b16 %v1181, %v1180
    %v1192 = vpack.c.b16 %v1183, %v1182
    %v1193 = vpack.c.b16 %v1185, %v1184
    %v1218 = vunpack.c.l.b16 %v802
    %v1219 = vunpack.c.l.b16 %v803
    %v1220 = vunpack.c.l.b16 %v804
    %v1221 = vunpack.c.l.b16 %v805
    %v1222 = vunpack.c.l.b16 %v806
    %v1223 = vunpack.c.l.b16 %v807
    %v1224 = vunpack.c.l.b16 %v808
    %v1225 = vunpack.c.l.b16 %v809
    %v1226 = vunpack.c.l.b16 %v810
    %v1227 = vunpack.c.l.b16 %v811
    %v1228 = vunpack.c.l.b16 %v812
    %v1229 = vunpack.c.l.b16 %v813
    %v1230 = vunpack.c.l.b16 %v814
    %v1231 = vunpack.c.l.b16 %v815
    %v1232 = vunpack.c.l.b16 %v816
    %v1233 = vunpack.c.l.b16 %v817
    %v1234 = vpack.c.b16 %v1219, %v1218
    %v1235 = vpack.c.b16 %v1221, %v1220
    %v1236 = vpack.c.b16 %v1223, %v1222
    %v1237 = vpack.c.b16 %v1225, %v1224
    %v1238 = vpack.c.b16 %v1227, %v1226
    %v1239 = vpack.c.b16 %v1229, %v1228
    %v1240 = vpack.c.b16 %v1231, %v1230
    %v1241 = vpack.c.b16 %v1233, %v1232
    %v1250 = vld [vmem:[#allocation8] sm:$0xf]
    %v1251 = vld [vmem:[#allocation8 + $0x4] sm:$0xf]
    %v1252 = vld [vmem:[#allocation8 + $0x8] sm:$0xf]
    %v1253 = vld [vmem:[#allocation8 + $0xc] sm:$0xf]
    %v1254 = vld [vmem:[#allocation8 + $0x10] sm:$0xf]
    %v1255 = vld [vmem:[#allocation8 + $0x14] sm:$0xf]
    %v1256 = vld [vmem:[#allocation8 + $0x18] sm:$0xf]
    %v1257 = vld [vmem:[#allocation8 + $0x1c] sm:$0xf]
    %v1258 = vld [vmem:[#allocation8 + $0x20] sm:$0xf]
    %v1259 = vld [vmem:[#allocation8 + $0x24] sm:$0xf]
    %v1260 = vld [vmem:[#allocation8 + $0x28] sm:$0xf]
    %v1261 = vld [vmem:[#allocation8 + $0x2c] sm:$0xf]
    %v1262 = vld [vmem:[#allocation8 + $0x30] sm:$0xf]
    %v1263 = vld [vmem:[#allocation8 + $0x34] sm:$0xf]
    %v1264 = vld [vmem:[#allocation8 + $0x38] sm:$0xf]
    %v1265 = vld [vmem:[#allocation8 + $0x3c] sm:$0xf]
    %v1266 = vld [vmem:[#allocation8 + $0x40] sm:$0xf]
    %v1267 = vld [vmem:[#allocation8 + $0x44] sm:$0xf]
    %v1268 = vld [vmem:[#allocation8 + $0x48] sm:$0xf]
    %v1269 = vld [vmem:[#allocation8 + $0x4c] sm:$0xf]
    %v1270 = vld [vmem:[#allocation8 + $0x50] sm:$0xf]
    %v1271 = vld [vmem:[#allocation8 + $0x54] sm:$0xf]
    %v1272 = vld [vmem:[#allocation8 + $0x58] sm:$0xf]
    %v1273 = vld [vmem:[#allocation8 + $0x5c] sm:$0xf]
    %v1274 = vld [vmem:[#allocation8 + $0x60] sm:$0xf]
    %v1275 = vld [vmem:[#allocation8 + $0x64] sm:$0xf]
    %v1276 = vld [vmem:[#allocation8 + $0x68] sm:$0xf]
    %v1277 = vld [vmem:[#allocation8 + $0x6c] sm:$0xf]
    %v1278 = vld [vmem:[#allocation8 + $0x70] sm:$0xf]
    %v1279 = vld [vmem:[#allocation8 + $0x74] sm:$0xf]
    %v1280 = vld [vmem:[#allocation8 + $0x78] sm:$0xf]
    %v1281 = vld [vmem:[#allocation8 + $0x7c] sm:$0xf]
    %v1282 = vld [vmem:[#allocation8 + $0x80] sm:$0xf]
    %v1283 = vld [vmem:[#allocation8 + $0x84] sm:$0xf]
    %v1284 = vld [vmem:[#allocation8 + $0x88] sm:$0xf]
    %v1285 = vld [vmem:[#allocation8 + $0x8c] sm:$0xf]
    %v1286 = vld [vmem:[#allocation8 + $0x90] sm:$0xf]
    %v1287 = vld [vmem:[#allocation8 + $0x94] sm:$0xf]
    %v1288 = vld [vmem:[#allocation8 + $0x98] sm:$0xf]
    %v1289 = vld [vmem:[#allocation8 + $0x9c] sm:$0xf]
    %v1290 = vld [vmem:[#allocation8 + $0xa0] sm:$0xf]
    %v1291 = vld [vmem:[#allocation8 + $0xa4] sm:$0xf]
    %v1292 = vld [vmem:[#allocation8 + $0xa8] sm:$0xf]
    %v1293 = vld [vmem:[#allocation8 + $0xac] sm:$0xf]
    %v1294 = vld [vmem:[#allocation8 + $0xb0] sm:$0xf]
    %v1295 = vld [vmem:[#allocation8 + $0xb4] sm:$0xf]
    %v1296 = vld [vmem:[#allocation8 + $0xb8] sm:$0xf]
    %v1297 = vld [vmem:[#allocation8 + $0xbc] sm:$0xf]
    %v1298 = vld [vmem:[#allocation8 + $0xc0] sm:$0xf]
    %v1299 = vld [vmem:[#allocation8 + $0xc4] sm:$0xf]
    %v1300 = vld [vmem:[#allocation8 + $0xc8] sm:$0xf]
    %v1301 = vld [vmem:[#allocation8 + $0xcc] sm:$0xf]
    %v1302 = vld [vmem:[#allocation8 + $0xd0] sm:$0xf]
    %v1303 = vld [vmem:[#allocation8 + $0xd4] sm:$0xf]
    %v1304 = vld [vmem:[#allocation8 + $0xd8] sm:$0xf]
    %v1305 = vld [vmem:[#allocation8 + $0xdc] sm:$0xf]
    %v1306 = vld [vmem:[#allocation8 + $0xe0] sm:$0xf]
    %v1307 = vld [vmem:[#allocation8 + $0xe4] sm:$0xf]
    %v1308 = vld [vmem:[#allocation8 + $0xe8] sm:$0xf]
    %v1309 = vld [vmem:[#allocation8 + $0xec] sm:$0xf]
    %v1310 = vld [vmem:[#allocation8 + $0xf0] sm:$0xf]
    %v1311 = vld [vmem:[#allocation8 + $0xf4] sm:$0xf]
    %v1312 = vld [vmem:[#allocation8 + $0xf8] sm:$0xf]
    %v1313 = vld [vmem:[#allocation8 + $0xfc] sm:$0xf]
    %v1314 = vld [vmem:[#allocation8 + $0x100] sm:$0xf]
    %v1315 = vld [vmem:[#allocation8 + $0x104] sm:$0xf]
    %v1316 = vld [vmem:[#allocation8 + $0x108] sm:$0xf]
    %v1317 = vld [vmem:[#allocation8 + $0x10c] sm:$0xf]
    %v1318 = vld [vmem:[#allocation8 + $0x110] sm:$0xf]
    %v1319 = vld [vmem:[#allocation8 + $0x114] sm:$0xf]
    %v1320 = vld [vmem:[#allocation8 + $0x118] sm:$0xf]
    %v1321 = vld [vmem:[#allocation8 + $0x11c] sm:$0xf]
    %v1322 = vld [vmem:[#allocation8 + $0x120] sm:$0xf]
    %v1323 = vld [vmem:[#allocation8 + $0x124] sm:$0xf]
    %v1324 = vld [vmem:[#allocation8 + $0x128] sm:$0xf]
    %v1325 = vld [vmem:[#allocation8 + $0x12c] sm:$0xf]
    %v1326 = vld [vmem:[#allocation8 + $0x130] sm:$0xf]
    %v1327 = vld [vmem:[#allocation8 + $0x134] sm:$0xf]
    %v1328 = vld [vmem:[#allocation8 + $0x138] sm:$0xf]
    %v1329 = vld [vmem:[#allocation8 + $0x13c] sm:$0xf]
    %v1330 = vld [vmem:[#allocation8 + $0x140] sm:$0xf]
    %v1331 = vld [vmem:[#allocation8 + $0x144] sm:$0xf]
    %v1332 = vld [vmem:[#allocation8 + $0x148] sm:$0xf]
    %v1333 = vld [vmem:[#allocation8 + $0x14c] sm:$0xf]
    %v1334 = vld [vmem:[#allocation8 + $0x150] sm:$0xf]
    %v1335 = vld [vmem:[#allocation8 + $0x154] sm:$0xf]
    %v1336 = vld [vmem:[#allocation8 + $0x158] sm:$0xf]
    %v1337 = vld [vmem:[#allocation8 + $0x15c] sm:$0xf]
    %v1338 = vld [vmem:[#allocation8 + $0x160] sm:$0xf]
    %v1339 = vld [vmem:[#allocation8 + $0x164] sm:$0xf]
    %v1340 = vld [vmem:[#allocation8 + $0x168] sm:$0xf]
    %v1341 = vld [vmem:[#allocation8 + $0x16c] sm:$0xf]
    %v1342 = vld [vmem:[#allocation8 + $0x170] sm:$0xf]
    %v1343 = vld [vmem:[#allocation8 + $0x174] sm:$0xf]
    %v1344 = vld [vmem:[#allocation8 + $0x178] sm:$0xf]
    %v1345 = vld [vmem:[#allocation8 + $0x17c] sm:$0xf]
    %v1346 = vld [vmem:[#allocation8 + $0x180] sm:$0xf]
    %v1347 = vld [vmem:[#allocation8 + $0x184] sm:$0xf]
    %v1348 = vld [vmem:[#allocation8 + $0x188] sm:$0xf]
    %v1349 = vld [vmem:[#allocation8 + $0x18c] sm:$0xf]
    %v1350 = vld [vmem:[#allocation8 + $0x190] sm:$0xf]
    %v1351 = vld [vmem:[#allocation8 + $0x194] sm:$0xf]
    %v1352 = vld [vmem:[#allocation8 + $0x198] sm:$0xf]
    %v1353 = vld [vmem:[#allocation8 + $0x19c] sm:$0xf]
    %v1354 = vld [vmem:[#allocation8 + $0x1a0] sm:$0xf]
    %v1355 = vld [vmem:[#allocation8 + $0x1a4] sm:$0xf]
    %v1356 = vld [vmem:[#allocation8 + $0x1a8] sm:$0xf]
    %v1357 = vld [vmem:[#allocation8 + $0x1ac] sm:$0xf]
    %v1358 = vld [vmem:[#allocation8 + $0x1b0] sm:$0xf]
    %v1359 = vld [vmem:[#allocation8 + $0x1b4] sm:$0xf]
    %v1360 = vld [vmem:[#allocation8 + $0x1b8] sm:$0xf]
    %v1361 = vld [vmem:[#allocation8 + $0x1bc] sm:$0xf]
    %v1362 = vld [vmem:[#allocation8 + $0x1c0] sm:$0xf]
    %v1363 = vld [vmem:[#allocation8 + $0x1c4] sm:$0xf]
    %v1364 = vld [vmem:[#allocation8 + $0x1c8] sm:$0xf]
    %v1365 = vld [vmem:[#allocation8 + $0x1cc] sm:$0xf]
    %v1366 = vld [vmem:[#allocation8 + $0x1d0] sm:$0xf]
    %v1367 = vld [vmem:[#allocation8 + $0x1d4] sm:$0xf]
    %v1368 = vld [vmem:[#allocation8 + $0x1d8] sm:$0xf]
    %v1369 = vld [vmem:[#allocation8 + $0x1dc] sm:$0xf]
    %v1370 = vld [vmem:[#allocation8 + $0x1e0] sm:$0xf]
    %v1371 = vld [vmem:[#allocation8 + $0x1e4] sm:$0xf]
    %v1372 = vld [vmem:[#allocation8 + $0x1e8] sm:$0xf]
    %v1373 = vld [vmem:[#allocation8 + $0x1ec] sm:$0xf]
    %v1374 = vld [vmem:[#allocation8 + $0x1f0] sm:$0xf]
    %v1375 = vld [vmem:[#allocation8 + $0x1f4] sm:$0xf]
    %v1376 = vld [vmem:[#allocation8 + $0x1f8] sm:$0xf]
    %v1377 = vld [vmem:[#allocation8 + $0x1fc] sm:$0xf]
    %v1378 = vld [vmem:[#allocation8 + $0x200] sm:$0xf]
    %v1379 = vld [vmem:[#allocation8 + $0x204] sm:$0xf]
    %v1380 = vld [vmem:[#allocation8 + $0x208] sm:$0xf]
    %v1381 = vld [vmem:[#allocation8 + $0x20c] sm:$0xf]
    %v1382 = vld [vmem:[#allocation8 + $0x210] sm:$0xf]
    %v1383 = vld [vmem:[#allocation8 + $0x214] sm:$0xf]
    %v1384 = vld [vmem:[#allocation8 + $0x218] sm:$0xf]
    %v1385 = vld [vmem:[#allocation8 + $0x21c] sm:$0xf]
    %v1386 = vld [vmem:[#allocation8 + $0x220] sm:$0xf]
    %v1387 = vld [vmem:[#allocation8 + $0x224] sm:$0xf]
    %v1388 = vld [vmem:[#allocation8 + $0x228] sm:$0xf]
    %v1389 = vld [vmem:[#allocation8 + $0x22c] sm:$0xf]
    %v1390 = vld [vmem:[#allocation8 + $0x230] sm:$0xf]
    %v1391 = vld [vmem:[#allocation8 + $0x234] sm:$0xf]
    %v1392 = vld [vmem:[#allocation8 + $0x238] sm:$0xf]
    %v1393 = vld [vmem:[#allocation8 + $0x23c] sm:$0xf]
    %v1538 = vunpack.c.l.b16 %v1250
    %v1539 = vunpack.c.l.b16 %v1251
    %v1540 = vunpack.c.l.b16 %v1252
    %v1541 = vunpack.c.l.b16 %v1253
    %v1542 = vunpack.c.l.b16 %v1254
    %v1543 = vunpack.c.l.b16 %v1255
    %v1544 = vunpack.c.l.b16 %v1256
    %v1545 = vunpack.c.l.b16 %v1257
    %v1546 = vunpack.c.l.b16 %v1258
    %v1547 = vunpack.c.l.b16 %v1259
    %v1548 = vunpack.c.l.b16 %v1260
    %v1549 = vunpack.c.l.b16 %v1261
    %v1550 = vunpack.c.l.b16 %v1262
    %v1551 = vunpack.c.l.b16 %v1263
    %v1552 = vunpack.c.l.b16 %v1264
    %v1553 = vunpack.c.l.b16 %v1265
    %v1554 = vunpack.c.l.b16 %v1266
    %v1555 = vunpack.c.l.b16 %v1267
    %v1556 = vunpack.c.l.b16 %v1268
    %v1557 = vunpack.c.l.b16 %v1269
    %v1558 = vunpack.c.l.b16 %v1270
    %v1559 = vunpack.c.l.b16 %v1271
    %v1560 = vunpack.c.l.b16 %v1272
    %v1561 = vunpack.c.l.b16 %v1273
    %v1562 = vunpack.c.l.b16 %v1274
    %v1563 = vunpack.c.l.b16 %v1275
    %v1564 = vunpack.c.l.b16 %v1276
    %v1565 = vunpack.c.l.b16 %v1277
    %v1566 = vunpack.c.l.b16 %v1278
    %v1567 = vunpack.c.l.b16 %v1279
    %v1568 = vunpack.c.l.b16 %v1280
    %v1569 = vunpack.c.l.b16 %v1281
    %v1570 = vunpack.c.l.b16 %v1282
    %v1571 = vunpack.c.l.b16 %v1283
    %v1572 = vunpack.c.l.b16 %v1284
    %v1573 = vunpack.c.l.b16 %v1285
    %v1574 = vunpack.c.l.b16 %v1286
    %v1575 = vunpack.c.l.b16 %v1287
    %v1576 = vunpack.c.l.b16 %v1288
    %v1577 = vunpack.c.l.b16 %v1289
    %v1578 = vunpack.c.l.b16 %v1290
    %v1579 = vunpack.c.l.b16 %v1291
    %v1580 = vunpack.c.l.b16 %v1292
    %v1581 = vunpack.c.l.b16 %v1293
    %v1582 = vunpack.c.l.b16 %v1294
    %v1583 = vunpack.c.l.b16 %v1295
    %v1584 = vunpack.c.l.b16 %v1296
    %v1585 = vunpack.c.l.b16 %v1297
    %v1586 = vunpack.c.l.b16 %v1298
    %v1587 = vunpack.c.l.b16 %v1299
    %v1588 = vunpack.c.l.b16 %v1300
    %v1589 = vunpack.c.l.b16 %v1301
    %v1590 = vunpack.c.l.b16 %v1302
    %v1591 = vunpack.c.l.b16 %v1303
    %v1592 = vunpack.c.l.b16 %v1304
    %v1593 = vunpack.c.l.b16 %v1305
    %v1594 = vunpack.c.l.b16 %v1306
    %v1595 = vunpack.c.l.b16 %v1307
    %v1596 = vunpack.c.l.b16 %v1308
    %v1597 = vunpack.c.l.b16 %v1309
    %v1598 = vunpack.c.l.b16 %v1310
    %v1599 = vunpack.c.l.b16 %v1311
    %v1600 = vunpack.c.l.b16 %v1312
    %v1601 = vunpack.c.l.b16 %v1313
    %v1602 = vunpack.c.l.b16 %v1314
    %v1603 = vunpack.c.l.b16 %v1315
    %v1604 = vunpack.c.l.b16 %v1316
    %v1605 = vunpack.c.l.b16 %v1317
    %v1606 = vunpack.c.l.b16 %v1318
    %v1607 = vunpack.c.l.b16 %v1319
    %v1608 = vunpack.c.l.b16 %v1320
    %v1609 = vunpack.c.l.b16 %v1321
    %v1610 = vunpack.c.l.b16 %v1322
    %v1611 = vunpack.c.l.b16 %v1323
    %v1612 = vunpack.c.l.b16 %v1324
    %v1613 = vunpack.c.l.b16 %v1325
    %v1614 = vunpack.c.l.b16 %v1326
    %v1615 = vunpack.c.l.b16 %v1327
    %v1616 = vunpack.c.l.b16 %v1328
    %v1617 = vunpack.c.l.b16 %v1329
    %v1618 = vunpack.c.l.b16 %v1330
    %v1619 = vunpack.c.l.b16 %v1331
    %v1620 = vunpack.c.l.b16 %v1332
    %v1621 = vunpack.c.l.b16 %v1333
    %v1622 = vunpack.c.l.b16 %v1334
    %v1623 = vunpack.c.l.b16 %v1335
    %v1624 = vunpack.c.l.b16 %v1336
    %v1625 = vunpack.c.l.b16 %v1337
    %v1626 = vunpack.c.l.b16 %v1338
    %v1627 = vunpack.c.l.b16 %v1339
    %v1628 = vunpack.c.l.b16 %v1340
    %v1629 = vunpack.c.l.b16 %v1341
    %v1630 = vunpack.c.l.b16 %v1342
    %v1631 = vunpack.c.l.b16 %v1343
    %v1632 = vunpack.c.l.b16 %v1344
    %v1633 = vunpack.c.l.b16 %v1345
    %v1634 = vunpack.c.l.b16 %v1346
    %v1635 = vunpack.c.l.b16 %v1347
    %v1636 = vunpack.c.l.b16 %v1348
    %v1637 = vunpack.c.l.b16 %v1349
    %v1638 = vunpack.c.l.b16 %v1350
    %v1639 = vunpack.c.l.b16 %v1351
    %v1640 = vunpack.c.l.b16 %v1352
    %v1641 = vunpack.c.l.b16 %v1353
    %v1642 = vunpack.c.l.b16 %v1354
    %v1643 = vunpack.c.l.b16 %v1355
    %v1644 = vunpack.c.l.b16 %v1356
    %v1645 = vunpack.c.l.b16 %v1357
    %v1646 = vunpack.c.l.b16 %v1358
    %v1647 = vunpack.c.l.b16 %v1359
    %v1648 = vunpack.c.l.b16 %v1360
    %v1649 = vunpack.c.l.b16 %v1361
    %v1650 = vunpack.c.l.b16 %v1362
    %v1651 = vunpack.c.l.b16 %v1363
    %v1652 = vunpack.c.l.b16 %v1364
    %v1653 = vunpack.c.l.b16 %v1365
    %v1654 = vunpack.c.l.b16 %v1366
    %v1655 = vunpack.c.l.b16 %v1367
    %v1656 = vunpack.c.l.b16 %v1368
    %v1657 = vunpack.c.l.b16 %v1369
    %v1658 = vunpack.c.l.b16 %v1370
    %v1659 = vunpack.c.l.b16 %v1371
    %v1660 = vunpack.c.l.b16 %v1372
    %v1661 = vunpack.c.l.b16 %v1373
    %v1662 = vunpack.c.l.b16 %v1374
    %v1663 = vunpack.c.l.b16 %v1375
    %v1664 = vunpack.c.l.b16 %v1376
    %v1665 = vunpack.c.l.b16 %v1377
    %v1666 = vunpack.c.l.b16 %v1378
    %v1667 = vunpack.c.l.b16 %v1379
    %v1668 = vunpack.c.l.b16 %v1380
    %v1669 = vunpack.c.l.b16 %v1381
    %v1670 = vunpack.c.l.b16 %v1382
    %v1671 = vunpack.c.l.b16 %v1383
    %v1672 = vunpack.c.l.b16 %v1384
    %v1673 = vunpack.c.l.b16 %v1385
    %v1674 = vunpack.c.l.b16 %v1386
    %v1675 = vunpack.c.l.b16 %v1387
    %v1676 = vunpack.c.l.b16 %v1388
    %v1677 = vunpack.c.l.b16 %v1389
    %v1678 = vunpack.c.l.b16 %v1390
    %v1679 = vunpack.c.l.b16 %v1391
    %v1680 = vunpack.c.l.b16 %v1392
    %v1681 = vunpack.c.l.b16 %v1393
    %v1682 = vpack.c.b16 %v1539, %v1538
    %v1683 = vpack.c.b16 %v1541, %v1540
    %v1684 = vpack.c.b16 %v1543, %v1542
    %v1685 = vpack.c.b16 %v1545, %v1544
    %v1686 = vpack.c.b16 %v1547, %v1546
    %v1687 = vpack.c.b16 %v1549, %v1548
    %v1688 = vpack.c.b16 %v1551, %v1550
    %v1689 = vpack.c.b16 %v1553, %v1552
    %v1690 = vpack.c.b16 %v1555, %v1554
    %v1691 = vpack.c.b16 %v1557, %v1556
    %v1692 = vpack.c.b16 %v1559, %v1558
    %v1693 = vpack.c.b16 %v1561, %v1560
    %v1694 = vpack.c.b16 %v1563, %v1562
    %v1695 = vpack.c.b16 %v1565, %v1564
    %v1696 = vpack.c.b16 %v1567, %v1566
    %v1697 = vpack.c.b16 %v1569, %v1568
    %v1698 = vpack.c.b16 %v1571, %v1570
    %v1699 = vpack.c.b16 %v1573, %v1572
    %v1700 = vpack.c.b16 %v1575, %v1574
    %v1701 = vpack.c.b16 %v1577, %v1576
    %v1702 = vpack.c.b16 %v1579, %v1578
    %v1703 = vpack.c.b16 %v1581, %v1580
    %v1704 = vpack.c.b16 %v1583, %v1582
    %v1705 = vpack.c.b16 %v1585, %v1584
    %v1706 = vpack.c.b16 %v1587, %v1586
    %v1707 = vpack.c.b16 %v1589, %v1588
    %v1708 = vpack.c.b16 %v1591, %v1590
    %v1709 = vpack.c.b16 %v1593, %v1592
    %v1710 = vpack.c.b16 %v1595, %v1594
    %v1711 = vpack.c.b16 %v1597, %v1596
    %v1712 = vpack.c.b16 %v1599, %v1598
    %v1713 = vpack.c.b16 %v1601, %v1600
    %v1714 = vpack.c.b16 %v1603, %v1602
    %v1715 = vpack.c.b16 %v1605, %v1604
    %v1716 = vpack.c.b16 %v1607, %v1606
    %v1717 = vpack.c.b16 %v1609, %v1608
    %v1718 = vpack.c.b16 %v1611, %v1610
    %v1719 = vpack.c.b16 %v1613, %v1612
    %v1720 = vpack.c.b16 %v1615, %v1614
    %v1721 = vpack.c.b16 %v1617, %v1616
    %v1722 = vpack.c.b16 %v1619, %v1618
    %v1723 = vpack.c.b16 %v1621, %v1620
    %v1724 = vpack.c.b16 %v1623, %v1622
    %v1725 = vpack.c.b16 %v1625, %v1624
    %v1726 = vpack.c.b16 %v1627, %v1626
    %v1727 = vpack.c.b16 %v1629, %v1628
    %v1728 = vpack.c.b16 %v1631, %v1630
    %v1729 = vpack.c.b16 %v1633, %v1632
    %v1730 = vpack.c.b16 %v1635, %v1634
    %v1731 = vpack.c.b16 %v1637, %v1636
    %v1732 = vpack.c.b16 %v1639, %v1638
    %v1733 = vpack.c.b16 %v1641, %v1640
    %v1734 = vpack.c.b16 %v1643, %v1642
    %v1735 = vpack.c.b16 %v1645, %v1644
    %v1736 = vpack.c.b16 %v1647, %v1646
    %v1737 = vpack.c.b16 %v1649, %v1648
    %v1738 = vpack.c.b16 %v1651, %v1650
    %v1739 = vpack.c.b16 %v1653, %v1652
    %v1740 = vpack.c.b16 %v1655, %v1654
    %v1741 = vpack.c.b16 %v1657, %v1656
    %v1742 = vpack.c.b16 %v1659, %v1658
    %v1743 = vpack.c.b16 %v1661, %v1660
    %v1744 = vpack.c.b16 %v1663, %v1662
    %v1745 = vpack.c.b16 %v1665, %v1664
    %v1746 = vpack.c.b16 %v1667, %v1666
    %v1747 = vpack.c.b16 %v1669, %v1668
    %v1748 = vpack.c.b16 %v1671, %v1670
    %v1749 = vpack.c.b16 %v1673, %v1672
    %v1750 = vpack.c.b16 %v1675, %v1674
    %v1751 = vpack.c.b16 %v1677, %v1676
    %v1752 = vpack.c.b16 %v1679, %v1678
    %v1753 = vpack.c.b16 %v1681, %v1680
    %1826 = vmatpush.bf16.msra.mxu0 %v1689
    %1827 = vmatpush.bf16.msra.mxu0 %v1688
    %1828 = vmatpush.bf16.msra.mxu0 %v1687
    %1829 = vmatpush.bf16.msra.mxu0 %v1686
    %1830 = vmatpush.bf16.msra.mxu0 %v1685
    %1831 = vmatpush.bf16.msra.mxu0 %v1684
    %1832 = vmatpush.bf16.msra.mxu0 %v1683
    %1833 = vmatpush.bf16.msra.mxu0 %v1682
    %1834 = vmatmul.bf16.gmra.mxu0 %v850
    %v1835 = vpop.f32.mrf.mxu0
    %v1836 = vadd.f32 0.0, %v1835
    %v1837 = vpop.f32.mrf.mxu0
    %v1838 = vadd.f32 0.0, %v1837
    %1839 = vmatmul.bf16.gmra.mxu0 %v851
    %v1840 = vpop.f32.mrf.mxu0
    %v1841 = vadd.f32 0.0, %v1840
    %v1842 = vpop.f32.mrf.mxu0
    %v1843 = vadd.f32 0.0, %v1842
    %1844 = vmatmul.bf16.gmra.mxu0 %v852
    %v1845 = vpop.f32.mrf.mxu0
    %v1846 = vadd.f32 0.0, %v1845
    %v1847 = vpop.f32.mrf.mxu0
    %v1848 = vadd.f32 0.0, %v1847
    %1849 = vmatmul.bf16.gmra.mxu0 %v853
    %v1850 = vpop.f32.mrf.mxu0
    %v1851 = vadd.f32 0.0, %v1850
    %v1852 = vpop.f32.mrf.mxu0
    %v1853 = vadd.f32 0.0, %v1852
    %1854 = vmatmul.bf16.gmra.mxu0 %v854
    %v1855 = vpop.f32.mrf.mxu0
    %v1856 = vadd.f32 0.0, %v1855
    %v1857 = vpop.f32.mrf.mxu0
    %v1858 = vadd.f32 0.0, %v1857
    %1859 = vmatmul.bf16.gmra.mxu0 %v855
    %v1860 = vpop.f32.mrf.mxu0
    %v1861 = vadd.f32 0.0, %v1860
    %v1862 = vpop.f32.mrf.mxu0
    %v1863 = vadd.f32 0.0, %v1862
    %1864 = vmatmul.bf16.gmra.mxu0 %v856
    %v1865 = vpop.f32.mrf.mxu0
    %v1866 = vadd.f32 0.0, %v1865
    %v1867 = vpop.f32.mrf.mxu0
    %v1868 = vadd.f32 0.0, %v1867
    %1869 = vmatmul.bf16.gmra.mxu0 %v857
    %v1870 = vpop.f32.mrf.mxu0
    %v1871 = vadd.f32 0.0, %v1870
    %v1872 = vpop.f32.mrf.mxu0
    %v1873 = vadd.f32 0.0, %v1872
    %1874 = vdwg.mxu0
    %1875 = vmatpush.bf16.msra.mxu0 %v1697
    %1876 = vmatpush.bf16.msra.mxu0 %v1696
    %1877 = vmatpush.bf16.msra.mxu0 %v1695
    %1878 = vmatpush.bf16.msra.mxu0 %v1694
    %1879 = vmatpush.bf16.msra.mxu0 %v1693
    %1880 = vmatpush.bf16.msra.mxu0 %v1692
    %1881 = vmatpush.bf16.msra.mxu0 %v1691
    %1882 = vmatpush.bf16.msra.mxu0 %v1690
    %1883 = vmatmul.bf16.gmra.mxu0 %v898
    %v1884 = vpop.f32.mrf.mxu0
    %v1885 = vadd.f32 %v1836, %v1884
    %v1886 = vpop.f32.mrf.mxu0
    %v1887 = vadd.f32 %v1838, %v1886
    %1888 = vmatmul.bf16.gmra.mxu0 %v899
    %v1889 = vpop.f32.mrf.mxu0
    %v1890 = vadd.f32 %v1841, %v1889
    %v1891 = vpop.f32.mrf.mxu0
    %v1892 = vadd.f32 %v1843, %v1891
    %1893 = vmatmul.bf16.gmra.mxu0 %v900
    %v1894 = vpop.f32.mrf.mxu0
    %v1895 = vadd.f32 %v1846, %v1894
    %v1896 = vpop.f32.mrf.mxu0
    %v1897 = vadd.f32 %v1848, %v1896
    %1898 = vmatmul.bf16.gmra.mxu0 %v901
    %v1899 = vpop.f32.mrf.mxu0
    %v1900 = vadd.f32 %v1851, %v1899
    %v1901 = vpop.f32.mrf.mxu0
    %v1902 = vadd.f32 %v1853, %v1901
    %1903 = vmatmul.bf16.gmra.mxu0 %v902
    %v1904 = vpop.f32.mrf.mxu0
    %v1905 = vadd.f32 %v1856, %v1904
    %v1906 = vpop.f32.mrf.mxu0
    %v1907 = vadd.f32 %v1858, %v1906
    %1908 = vmatmul.bf16.gmra.mxu0 %v903
    %v1909 = vpop.f32.mrf.mxu0
    %v1910 = vadd.f32 %v1861, %v1909
    %v1911 = vpop.f32.mrf.mxu0
    %v1912 = vadd.f32 %v1863, %v1911
    %1913 = vmatmul.bf16.gmra.mxu0 %v904
    %v1914 = vpop.f32.mrf.mxu0
    %v1915 = vadd.f32 %v1866, %v1914
    %v1916 = vpop.f32.mrf.mxu0
    %v1917 = vadd.f32 %v1868, %v1916
    %1918 = vmatmul.bf16.gmra.mxu0 %v905
    %v1919 = vpop.f32.mrf.mxu0
    %v1920 = vadd.f32 %v1871, %v1919
    %v1921 = vpop.f32.mrf.mxu0
    %v1922 = vadd.f32 %v1873, %v1921
    %1923 = vdwg.mxu0
    %1924 = vmatpush.bf16.msra.mxu0 %v1705
    %1925 = vmatpush.bf16.msra.mxu0 %v1704
    %1926 = vmatpush.bf16.msra.mxu0 %v1703
    %1927 = vmatpush.bf16.msra.mxu0 %v1702
    %1928 = vmatpush.bf16.msra.mxu0 %v1701
    %1929 = vmatpush.bf16.msra.mxu0 %v1700
    %1930 = vmatpush.bf16.msra.mxu0 %v1699
    %1931 = vmatpush.bf16.msra.mxu0 %v1698
    %1932 = vmatmul.bf16.gmra.mxu0 %v946
    %v1933 = vpop.f32.mrf.mxu0
    %v1934 = vadd.f32 %v1885, %v1933
    %v1935 = vpop.f32.mrf.mxu0
    %v1936 = vadd.f32 %v1887, %v1935
    %1937 = vmatmul.bf16.gmra.mxu0 %v947
    %v1938 = vpop.f32.mrf.mxu0
    %v1939 = vadd.f32 %v1890, %v1938
    %v1940 = vpop.f32.mrf.mxu0
    %v1941 = vadd.f32 %v1892, %v1940
    %1942 = vmatmul.bf16.gmra.mxu0 %v948
    %v1943 = vpop.f32.mrf.mxu0
    %v1944 = vadd.f32 %v1895, %v1943
    %v1945 = vpop.f32.mrf.mxu0
    %v1946 = vadd.f32 %v1897, %v1945
    %1947 = vmatmul.bf16.gmra.mxu0 %v949
    %v1948 = vpop.f32.mrf.mxu0
    %v1949 = vadd.f32 %v1900, %v1948
    %v1950 = vpop.f32.mrf.mxu0
    %v1951 = vadd.f32 %v1902, %v1950
    %1952 = vmatmul.bf16.gmra.mxu0 %v950
    %v1953 = vpop.f32.mrf.mxu0
    %v1954 = vadd.f32 %v1905, %v1953
    %v1955 = vpop.f32.mrf.mxu0
    %v1956 = vadd.f32 %v1907, %v1955
    %1957 = vmatmul.bf16.gmra.mxu0 %v951
    %v1958 = vpop.f32.mrf.mxu0
    %v1959 = vadd.f32 %v1910, %v1958
    %v1960 = vpop.f32.mrf.mxu0
    %v1961 = vadd.f32 %v1912, %v1960
    %1962 = vmatmul.bf16.gmra.mxu0 %v952
    %v1963 = vpop.f32.mrf.mxu0
    %v1964 = vadd.f32 %v1915, %v1963
    %v1965 = vpop.f32.mrf.mxu0
    %v1966 = vadd.f32 %v1917, %v1965
    %1967 = vmatmul.bf16.gmra.mxu0 %v953
    %v1968 = vpop.f32.mrf.mxu0
    %v1969 = vadd.f32 %v1920, %v1968
    %v1970 = vpop.f32.mrf.mxu0
    %v1971 = vadd.f32 %v1922, %v1970
    %1972 = vdwg.mxu0
    %1973 = vmatpush.bf16.msra.mxu0 %v1713
    %1974 = vmatpush.bf16.msra.mxu0 %v1712
    %1975 = vmatpush.bf16.msra.mxu0 %v1711
    %1976 = vmatpush.bf16.msra.mxu0 %v1710
    %1977 = vmatpush.bf16.msra.mxu0 %v1709
    %1978 = vmatpush.bf16.msra.mxu0 %v1708
    %1979 = vmatpush.bf16.msra.mxu0 %v1707
    %1980 = vmatpush.bf16.msra.mxu0 %v1706
    %1981 = vmatmul.bf16.gmra.mxu0 %v994
    %v1982 = vpop.f32.mrf.mxu0
    %v1983 = vadd.f32 %v1934, %v1982
    %v1984 = vpop.f32.mrf.mxu0
    %v1985 = vadd.f32 %v1936, %v1984
    %1986 = vmatmul.bf16.gmra.mxu0 %v995
    %v1987 = vpop.f32.mrf.mxu0
    %v1988 = vadd.f32 %v1939, %v1987
    %v1989 = vpop.f32.mrf.mxu0
    %v1990 = vadd.f32 %v1941, %v1989
    %1991 = vmatmul.bf16.gmra.mxu0 %v996
    %v1992 = vpop.f32.mrf.mxu0
    %v1993 = vadd.f32 %v1944, %v1992
    %v1994 = vpop.f32.mrf.mxu0
    %v1995 = vadd.f32 %v1946, %v1994
    %1996 = vmatmul.bf16.gmra.mxu0 %v997
    %v1997 = vpop.f32.mrf.mxu0
    %v1998 = vadd.f32 %v1949, %v1997
    %v1999 = vpop.f32.mrf.mxu0
    %v2000 = vadd.f32 %v1951, %v1999
    %2001 = vmatmul.bf16.gmra.mxu0 %v998
    %v2002 = vpop.f32.mrf.mxu0
    %v2003 = vadd.f32 %v1954, %v2002
    %v2004 = vpop.f32.mrf.mxu0
    %v2005 = vadd.f32 %v1956, %v2004
    %2006 = vmatmul.bf16.gmra.mxu0 %v999
    %v2007 = vpop.f32.mrf.mxu0
    %v2008 = vadd.f32 %v1959, %v2007
    %v2009 = vpop.f32.mrf.mxu0
    %v2010 = vadd.f32 %v1961, %v2009
    %2011 = vmatmul.bf16.gmra.mxu0 %v1000
    %v2012 = vpop.f32.mrf.mxu0
    %v2013 = vadd.f32 %v1964, %v2012
    %v2014 = vpop.f32.mrf.mxu0
    %v2015 = vadd.f32 %v1966, %v2014
    %2016 = vmatmul.bf16.gmra.mxu0 %v1001
    %v2017 = vpop.f32.mrf.mxu0
    %v2018 = vadd.f32 %v1969, %v2017
    %v2019 = vpop.f32.mrf.mxu0
    %v2020 = vadd.f32 %v1971, %v2019
    %2021 = vdwg.mxu0
    %2022 = vmatpush.bf16.msra.mxu0 %v1721
    %2023 = vmatpush.bf16.msra.mxu0 %v1720
    %2024 = vmatpush.bf16.msra.mxu0 %v1719
    %2025 = vmatpush.bf16.msra.mxu0 %v1718
    %2026 = vmatpush.bf16.msra.mxu0 %v1717
    %2027 = vmatpush.bf16.msra.mxu0 %v1716
    %2028 = vmatpush.bf16.msra.mxu0 %v1715
    %2029 = vmatpush.bf16.msra.mxu0 %v1714
    %2030 = vmatmul.bf16.gmra.mxu0 %v1042
    %v2031 = vpop.f32.mrf.mxu0
    %v2032 = vadd.f32 %v1983, %v2031
    %v2033 = vpop.f32.mrf.mxu0
    %v2034 = vadd.f32 %v1985, %v2033
    %2035 = vmatmul.bf16.gmra.mxu0 %v1043
    %v2036 = vpop.f32.mrf.mxu0
    %v2037 = vadd.f32 %v1988, %v2036
    %v2038 = vpop.f32.mrf.mxu0
    %v2039 = vadd.f32 %v1990, %v2038
    %2040 = vmatmul.bf16.gmra.mxu0 %v1044
    %v2041 = vpop.f32.mrf.mxu0
    %v2042 = vadd.f32 %v1993, %v2041
    %v2043 = vpop.f32.mrf.mxu0
    %v2044 = vadd.f32 %v1995, %v2043
    %2045 = vmatmul.bf16.gmra.mxu0 %v1045
    %v2046 = vpop.f32.mrf.mxu0
    %v2047 = vadd.f32 %v1998, %v2046
    %v2048 = vpop.f32.mrf.mxu0
    %v2049 = vadd.f32 %v2000, %v2048
    %2050 = vmatmul.bf16.gmra.mxu0 %v1046
    %v2051 = vpop.f32.mrf.mxu0
    %v2052 = vadd.f32 %v2003, %v2051
    %v2053 = vpop.f32.mrf.mxu0
    %v2054 = vadd.f32 %v2005, %v2053
    %2055 = vmatmul.bf16.gmra.mxu0 %v1047
    %v2056 = vpop.f32.mrf.mxu0
    %v2057 = vadd.f32 %v2008, %v2056
    %v2058 = vpop.f32.mrf.mxu0
    %v2059 = vadd.f32 %v2010, %v2058
    %2060 = vmatmul.bf16.gmra.mxu0 %v1048
    %v2061 = vpop.f32.mrf.mxu0
    %v2062 = vadd.f32 %v2013, %v2061
    %v2063 = vpop.f32.mrf.mxu0
    %v2064 = vadd.f32 %v2015, %v2063
    %2065 = vmatmul.bf16.gmra.mxu0 %v1049
    %v2066 = vpop.f32.mrf.mxu0
    %v2067 = vadd.f32 %v2018, %v2066
    %v2068 = vpop.f32.mrf.mxu0
    %v2069 = vadd.f32 %v2020, %v2068
    %2070 = vdwg.mxu0
    %2071 = vmatpush.bf16.msra.mxu0 %v1729
    %2072 = vmatpush.bf16.msra.mxu0 %v1728
    %2073 = vmatpush.bf16.msra.mxu0 %v1727
    %2074 = vmatpush.bf16.msra.mxu0 %v1726
    %2075 = vmatpush.bf16.msra.mxu0 %v1725
    %2076 = vmatpush.bf16.msra.mxu0 %v1724
    %2077 = vmatpush.bf16.msra.mxu0 %v1723
    %2078 = vmatpush.bf16.msra.mxu0 %v1722
    %2079 = vmatmul.bf16.gmra.mxu0 %v1090
    %v2080 = vpop.f32.mrf.mxu0
    %v2081 = vadd.f32 %v2032, %v2080
    %v2082 = vpop.f32.mrf.mxu0
    %v2083 = vadd.f32 %v2034, %v2082
    %2084 = vmatmul.bf16.gmra.mxu0 %v1091
    %v2085 = vpop.f32.mrf.mxu0
    %v2086 = vadd.f32 %v2037, %v2085
    %v2087 = vpop.f32.mrf.mxu0
    %v2088 = vadd.f32 %v2039, %v2087
    %2089 = vmatmul.bf16.gmra.mxu0 %v1092
    %v2090 = vpop.f32.mrf.mxu0
    %v2091 = vadd.f32 %v2042, %v2090
    %v2092 = vpop.f32.mrf.mxu0
    %v2093 = vadd.f32 %v2044, %v2092
    %2094 = vmatmul.bf16.gmra.mxu0 %v1093
    %v2095 = vpop.f32.mrf.mxu0
    %v2096 = vadd.f32 %v2047, %v2095
    %v2097 = vpop.f32.mrf.mxu0
    %v2098 = vadd.f32 %v2049, %v2097
    %2099 = vmatmul.bf16.gmra.mxu0 %v1094
    %v2100 = vpop.f32.mrf.mxu0
    %v2101 = vadd.f32 %v2052, %v2100
    %v2102 = vpop.f32.mrf.mxu0
    %v2103 = vadd.f32 %v2054, %v2102
    %2104 = vmatmul.bf16.gmra.mxu0 %v1095
    %v2105 = vpop.f32.mrf.mxu0
    %v2106 = vadd.f32 %v2057, %v2105
    %v2107 = vpop.f32.mrf.mxu0
    %v2108 = vadd.f32 %v2059, %v2107
    %2109 = vmatmul.bf16.gmra.mxu0 %v1096
    %v2110 = vpop.f32.mrf.mxu0
    %v2111 = vadd.f32 %v2062, %v2110
    %v2112 = vpop.f32.mrf.mxu0
    %v2113 = vadd.f32 %v2064, %v2112
    %2114 = vmatmul.bf16.gmra.mxu0 %v1097
    %v2115 = vpop.f32.mrf.mxu0
    %v2116 = vadd.f32 %v2067, %v2115
    %v2117 = vpop.f32.mrf.mxu0
    %v2118 = vadd.f32 %v2069, %v2117
    %2119 = vdwg.mxu0
    %2120 = vmatpush.bf16.msra.mxu0 %v1737
    %2121 = vmatpush.bf16.msra.mxu0 %v1736
    %2122 = vmatpush.bf16.msra.mxu0 %v1735
    %2123 = vmatpush.bf16.msra.mxu0 %v1734
    %2124 = vmatpush.bf16.msra.mxu0 %v1733
    %2125 = vmatpush.bf16.msra.mxu0 %v1732
    %2126 = vmatpush.bf16.msra.mxu0 %v1731
    %2127 = vmatpush.bf16.msra.mxu0 %v1730
    %2128 = vmatmul.bf16.gmra.mxu0 %v1138
    %v2129 = vpop.f32.mrf.mxu0
    %v2130 = vadd.f32 %v2081, %v2129
    %v2131 = vpop.f32.mrf.mxu0
    %v2132 = vadd.f32 %v2083, %v2131
    %2133 = vmatmul.bf16.gmra.mxu0 %v1139
    %v2134 = vpop.f32.mrf.mxu0
    %v2135 = vadd.f32 %v2086, %v2134
    %v2136 = vpop.f32.mrf.mxu0
    %v2137 = vadd.f32 %v2088, %v2136
    %2138 = vmatmul.bf16.gmra.mxu0 %v1140
    %v2139 = vpop.f32.mrf.mxu0
    %v2140 = vadd.f32 %v2091, %v2139
    %v2141 = vpop.f32.mrf.mxu0
    %v2142 = vadd.f32 %v2093, %v2141
    %2143 = vmatmul.bf16.gmra.mxu0 %v1141
    %v2144 = vpop.f32.mrf.mxu0
    %v2145 = vadd.f32 %v2096, %v2144
    %v2146 = vpop.f32.mrf.mxu0
    %v2147 = vadd.f32 %v2098, %v2146
    %2148 = vmatmul.bf16.gmra.mxu0 %v1142
    %v2149 = vpop.f32.mrf.mxu0
    %v2150 = vadd.f32 %v2101, %v2149
    %v2151 = vpop.f32.mrf.mxu0
    %v2152 = vadd.f32 %v2103, %v2151
    %2153 = vmatmul.bf16.gmra.mxu0 %v1143
    %v2154 = vpop.f32.mrf.mxu0
    %v2155 = vadd.f32 %v2106, %v2154
    %v2156 = vpop.f32.mrf.mxu0
    %v2157 = vadd.f32 %v2108, %v2156
    %2158 = vmatmul.bf16.gmra.mxu0 %v1144
    %v2159 = vpop.f32.mrf.mxu0
    %v2160 = vadd.f32 %v2111, %v2159
    %v2161 = vpop.f32.mrf.mxu0
    %v2162 = vadd.f32 %v2113, %v2161
    %2163 = vmatmul.bf16.gmra.mxu0 %v1145
    %v2164 = vpop.f32.mrf.mxu0
    %v2165 = vadd.f32 %v2116, %v2164
    %v2166 = vpop.f32.mrf.mxu0
    %v2167 = vadd.f32 %v2118, %v2166
    %2168 = vdwg.mxu0
    %2169 = vmatpush.bf16.msra.mxu0 %v1745
    %2170 = vmatpush.bf16.msra.mxu0 %v1744
    %2171 = vmatpush.bf16.msra.mxu0 %v1743
    %2172 = vmatpush.bf16.msra.mxu0 %v1742
    %2173 = vmatpush.bf16.msra.mxu0 %v1741
    %2174 = vmatpush.bf16.msra.mxu0 %v1740
    %2175 = vmatpush.bf16.msra.mxu0 %v1739
    %2176 = vmatpush.bf16.msra.mxu0 %v1738
    %2177 = vmatmul.bf16.gmra.mxu0 %v1186
    %v2178 = vpop.f32.mrf.mxu0
    %v2179 = vadd.f32 %v2130, %v2178
    %v2180 = vpop.f32.mrf.mxu0
    %v2181 = vadd.f32 %v2132, %v2180
    %2182 = vmatmul.bf16.gmra.mxu0 %v1187
    %v2183 = vpop.f32.mrf.mxu0
    %v2184 = vadd.f32 %v2135, %v2183
    %v2185 = vpop.f32.mrf.mxu0
    %v2186 = vadd.f32 %v2137, %v2185
    %2187 = vmatmul.bf16.gmra.mxu0 %v1188
    %v2188 = vpop.f32.mrf.mxu0
    %v2189 = vadd.f32 %v2140, %v2188
    %v2190 = vpop.f32.mrf.mxu0
    %v2191 = vadd.f32 %v2142, %v2190
    %2192 = vmatmul.bf16.gmra.mxu0 %v1189
    %v2193 = vpop.f32.mrf.mxu0
    %v2194 = vadd.f32 %v2145, %v2193
    %v2195 = vpop.f32.mrf.mxu0
    %v2196 = vadd.f32 %v2147, %v2195
    %2197 = vmatmul.bf16.gmra.mxu0 %v1190
    %v2198 = vpop.f32.mrf.mxu0
    %v2199 = vadd.f32 %v2150, %v2198
    %v2200 = vpop.f32.mrf.mxu0
    %v2201 = vadd.f32 %v2152, %v2200
    %2202 = vmatmul.bf16.gmra.mxu0 %v1191
    %v2203 = vpop.f32.mrf.mxu0
    %v2204 = vadd.f32 %v2155, %v2203
    %v2205 = vpop.f32.mrf.mxu0
    %v2206 = vadd.f32 %v2157, %v2205
    %2207 = vmatmul.bf16.gmra.mxu0 %v1192
    %v2208 = vpop.f32.mrf.mxu0
    %v2209 = vadd.f32 %v2160, %v2208
    %v2210 = vpop.f32.mrf.mxu0
    %v2211 = vadd.f32 %v2162, %v2210
    %2212 = vmatmul.bf16.gmra.mxu0 %v1193
    %v2213 = vpop.f32.mrf.mxu0
    %v2214 = vadd.f32 %v2165, %v2213
    %v2215 = vpop.f32.mrf.mxu0
    %v2216 = vadd.f32 %v2167, %v2215
    %2217 = vdwg.mxu0
    %2218 = vmatpush.bf16.msra.mxu0 %v1753
    %2219 = vmatpush.bf16.msra.mxu0 %v1752
    %2220 = vmatpush.bf16.msra.mxu0 %v1751
    %2221 = vmatpush.bf16.msra.mxu0 %v1750
    %2222 = vmatpush.bf16.msra.mxu0 %v1749
    %2223 = vmatpush.bf16.msra.mxu0 %v1748
    %2224 = vmatpush.bf16.msra.mxu0 %v1747
    %2225 = vmatpush.bf16.msra.mxu0 %v1746
    %2226 = vmatmul.bf16.gmra.mxu0 %v1234
    %v2227 = vpop.f32.mrf.mxu0
    %v2228 = vadd.f32 %v2179, %v2227
    %v2229 = vpop.f32.mrf.mxu0
    %v2230 = vadd.f32 %v2181, %v2229
    %2231 = vmatmul.bf16.gmra.mxu0 %v1235
    %v2232 = vpop.f32.mrf.mxu0
    %v2233 = vadd.f32 %v2184, %v2232
    %v2234 = vpop.f32.mrf.mxu0
    %v2235 = vadd.f32 %v2186, %v2234
    %2236 = vmatmul.bf16.gmra.mxu0 %v1236
    %v2237 = vpop.f32.mrf.mxu0
    %v2238 = vadd.f32 %v2189, %v2237
    %v2239 = vpop.f32.mrf.mxu0
    %v2240 = vadd.f32 %v2191, %v2239
    %2241 = vmatmul.bf16.gmra.mxu0 %v1237
    %v2242 = vpop.f32.mrf.mxu0
    %v2243 = vadd.f32 %v2194, %v2242
    %v2244 = vpop.f32.mrf.mxu0
    %v2245 = vadd.f32 %v2196, %v2244
    %2246 = vmatmul.bf16.gmra.mxu0 %v1238
    %v2247 = vpop.f32.mrf.mxu0
    %v2248 = vadd.f32 %v2199, %v2247
    %v2249 = vpop.f32.mrf.mxu0
    %v2250 = vadd.f32 %v2201, %v2249
    %2251 = vmatmul.bf16.gmra.mxu0 %v1239
    %v2252 = vpop.f32.mrf.mxu0
    %v2253 = vadd.f32 %v2204, %v2252
    %v2254 = vpop.f32.mrf.mxu0
    %v2255 = vadd.f32 %v2206, %v2254
    %2256 = vmatmul.bf16.gmra.mxu0 %v1240
    %v2257 = vpop.f32.mrf.mxu0
    %v2258 = vadd.f32 %v2209, %v2257
    %v2259 = vpop.f32.mrf.mxu0
    %v2260 = vadd.f32 %v2211, %v2259
    %2261 = vmatmul.bf16.gmra.mxu0 %v1241
    %v2262 = vpop.f32.mrf.mxu0
    %v2263 = vadd.f32 %v2214, %v2262
    %v2264 = vpop.f32.mrf.mxu0
    %v2265 = vadd.f32 %v2216, %v2264
    %2266 = vdwg.mxu0
    %v2267 = vld [vmem:[%s5] sm:$0x1]
    %v2268 = vld [vmem:[%s6] sm:$0x1]
    %v2269 = vadd.f32 %v2228, %v2230
    %v2270 = vadd.f32 %v2269, %v2233
    %v2271 = vadd.f32 %v2270, %v2235
    %v2272 = vadd.f32 %v2271, %v2238
    %v2273 = vadd.f32 %v2272, %v2240
    %v2274 = vadd.f32 %v2273, %v2243
    %v2275 = vadd.f32 %v2274, %v2245
    %v2276 = vadd.f32 %v2275, %v2248
    %v2277 = vadd.f32 %v2276, %v2250
    %v2278 = vadd.f32 %v2277, %v2253
    %v2279 = vadd.f32 %v2278, %v2255
    %v2280 = vadd.f32 %v2279, %v2258
    %v2281 = vadd.f32 %v2280, %v2260
    %v2282 = vadd.f32 %v2281, %v2263
    %v2283 = vadd.f32 %v2282, %v2265
    %v2284 = vrot.slane %v2283, 4
    %v2285 = vadd.f32 %v2283, %v2284
    %v2286 = vrot.slane %v2285, 2
    %v2287 = vadd.f32 %v2285, %v2286
    %v2288 = vrot.slane %v2287, 1
    %v2289 = vadd.f32 %v2287, %v2288
    %v2290 = vmul.f32 %v2289, 0.0078125
    %v2291 = vmul.f32 %v2228, %v2228
    %v2292 = vmul.f32 %v2230, %v2230
    %v2293 = vmul.f32 %v2233, %v2233
    %v2294 = vmul.f32 %v2235, %v2235
    %v2295 = vmul.f32 %v2238, %v2238
    %v2296 = vmul.f32 %v2240, %v2240
    %v2297 = vmul.f32 %v2243, %v2243
    %v2298 = vmul.f32 %v2245, %v2245
    %v2299 = vmul.f32 %v2248, %v2248
    %v2300 = vmul.f32 %v2250, %v2250
    %v2301 = vmul.f32 %v2253, %v2253
    %v2302 = vmul.f32 %v2255, %v2255
    %v2303 = vmul.f32 %v2258, %v2258
    %v2304 = vmul.f32 %v2260, %v2260
    %v2305 = vmul.f32 %v2263, %v2263
    %v2306 = vmul.f32 %v2265, %v2265
    %v2307 = vadd.f32 %v2291, %v2292
    %v2308 = vadd.f32 %v2307, %v2293
    %v2309 = vadd.f32 %v2308, %v2294
    %v2310 = vadd.f32 %v2309, %v2295
    %v2311 = vadd.f32 %v2310, %v2296
    %v2312 = vadd.f32 %v2311, %v2297
    %v2313 = vadd.f32 %v2312, %v2298
    %v2314 = vadd.f32 %v2313, %v2299
    %v2315 = vadd.f32 %v2314, %v2300
    %v2316 = vadd.f32 %v2315, %v2301
    %v2317 = vadd.f32 %v2316, %v2302
    %v2318 = vadd.f32 %v2317, %v2303
    %v2319 = vadd.f32 %v2318, %v2304
    %v2320 = vadd.f32 %v2319, %v2305
    %v2321 = vadd.f32 %v2320, %v2306
    %v2322 = vrot.slane %v2321, 4
    %v2323 = vadd.f32 %v2321, %v2322
    %v2324 = vrot.slane %v2323, 2
    %v2325 = vadd.f32 %v2323, %v2324
    %v2326 = vrot.slane %v2325, 1
    %v2327 = vadd.f32 %v2325, %v2326
    %v2328 = vmul.f32 %v2327, 0.0078125
    %v2329 = vmul.f32 %v2290, %v2290
    %v2330 = vsub.f32 %v2328, %v2329
    %v2331 = vadd.f32 %v2330, 1e-05
    %v2332 = vrsqrt.pop %v2331
    %v2333 = vmul.f32 %v2332, %v2331
    %v2334 = vmul.f32 %v2333, %v2332
    %v2335 = vmul.f32 0.5, %v2334
    %v2336 = vsub.f32 1.5, %v2335
    %v2337 = vmul.f32 %v2332, %v2336
    %vm2338 = vweird.f32 %v2331
    %vm2339 = vweird.f32 %v2332
    %vm2340 = vmor %vm2338, %vm2339
    %v2341 = vsel %vm2340, %v2332, %v2337
    %v2342 = vmul.f32 %v2267, %v2341
    %v2344 = vperm.slane %v2342, 0
    %v2346 = vmul.f32 %v2228, %v2344
    %v2347 = vmul.f32 %v2230, %v2344
    %v2348 = vmul.f32 %v2233, %v2344
    %v2349 = vmul.f32 %v2235, %v2344
    %v2350 = vmul.f32 %v2238, %v2344
    %v2351 = vmul.f32 %v2240, %v2344
    %v2352 = vmul.f32 %v2243, %v2344
    %v2353 = vmul.f32 %v2245, %v2344
    %v2354 = vmul.f32 %v2248, %v2344
    %v2355 = vmul.f32 %v2250, %v2344
    %v2356 = vmul.f32 %v2253, %v2344
    %v2357 = vmul.f32 %v2255, %v2344
    %v2358 = vmul.f32 %v2258, %v2344
    %v2359 = vmul.f32 %v2260, %v2344
    %v2360 = vmul.f32 %v2263, %v2344
    %v2361 = vmul.f32 %v2265, %v2344
    %v2362 = vmul.f32 %v2290, %v2342
    %v2363 = vsub.f32 %v2268, %v2362
    %v2365 = vperm.slane %v2363, 0
    %v2367 = vadd.f32 %v2346, %v2365
    %v2368 = vadd.f32 %v2347, %v2365
    %v2369 = vadd.f32 %v2348, %v2365
    %v2370 = vadd.f32 %v2349, %v2365
    %v2371 = vadd.f32 %v2350, %v2365
    %v2372 = vadd.f32 %v2351, %v2365
    %v2373 = vadd.f32 %v2352, %v2365
    %v2374 = vadd.f32 %v2353, %v2365
    %v2375 = vadd.f32 %v2354, %v2365
    %v2376 = vadd.f32 %v2355, %v2365
    %v2377 = vadd.f32 %v2356, %v2365
    %v2378 = vadd.f32 %v2357, %v2365
    %v2379 = vadd.f32 %v2358, %v2365
    %v2380 = vadd.f32 %v2359, %v2365
    %v2381 = vadd.f32 %v2360, %v2365
    %v2382 = vadd.f32 %v2361, %v2365
    %v2383 = vmax.f32 %v2367, 0.0
    %v2384 = vmax.f32 %v2368, 0.0
    %v2385 = vmax.f32 %v2369, 0.0
    %v2386 = vmax.f32 %v2370, 0.0
    %v2387 = vmax.f32 %v2371, 0.0
    %v2388 = vmax.f32 %v2372, 0.0
    %v2389 = vmax.f32 %v2373, 0.0
    %v2390 = vmax.f32 %v2374, 0.0
    %v2391 = vmax.f32 %v2375, 0.0
    %v2392 = vmax.f32 %v2376, 0.0
    %v2393 = vmax.f32 %v2377, 0.0
    %v2394 = vmax.f32 %v2378, 0.0
    %v2395 = vmax.f32 %v2379, 0.0
    %v2396 = vmax.f32 %v2380, 0.0
    %v2397 = vmax.f32 %v2381, 0.0
    %v2398 = vmax.f32 %v2382, 0.0
    %v2399 = vpack.c.bf16 %v2384, %v2383
    %v2400 = vpack.c.bf16 %v2386, %v2385
    %v2401 = vpack.c.bf16 %v2388, %v2387
    %v2402 = vpack.c.bf16 %v2390, %v2389
    %v2403 = vpack.c.bf16 %v2392, %v2391
    %v2404 = vpack.c.bf16 %v2394, %v2393
    %v2405 = vpack.c.bf16 %v2396, %v2395
    %v2406 = vpack.c.bf16 %v2398, %v2397
    %v2407 = vld [vmem:[#allocation9] sm:$0xf]
    %v2408 = vld [vmem:[#allocation9 + $0x4] sm:$0xf]
    %v2409 = vld [vmem:[#allocation9 + $0x8] sm:$0xf]
    %v2410 = vld [vmem:[#allocation9 + $0xc] sm:$0xf]
    %v2411 = vld [vmem:[#allocation9 + $0x10] sm:$0xf]
    %v2412 = vld [vmem:[#allocation9 + $0x14] sm:$0xf]
    %v2413 = vld [vmem:[#allocation9 + $0x18] sm:$0xf]
    %v2414 = vld [vmem:[#allocation9 + $0x1c] sm:$0xf]
    %v2415 = vld [vmem:[#allocation9 + $0x20] sm:$0xf]
    %v2416 = vld [vmem:[#allocation9 + $0x24] sm:$0xf]
    %v2417 = vld [vmem:[#allocation9 + $0x28] sm:$0xf]
    %v2418 = vld [vmem:[#allocation9 + $0x2c] sm:$0xf]
    %v2419 = vld [vmem:[#allocation9 + $0x30] sm:$0xf]
    %v2420 = vld [vmem:[#allocation9 + $0x34] sm:$0xf]
    %v2421 = vld [vmem:[#allocation9 + $0x38] sm:$0xf]
    %v2422 = vld [vmem:[#allocation9 + $0x3c] sm:$0xf]
    %v2439 = vunpack.c.l.b16 %v2407
    %v2440 = vunpack.c.l.b16 %v2408
    %v2441 = vunpack.c.l.b16 %v2409
    %v2442 = vunpack.c.l.b16 %v2410
    %v2443 = vunpack.c.l.b16 %v2411
    %v2444 = vunpack.c.l.b16 %v2412
    %v2445 = vunpack.c.l.b16 %v2413
    %v2446 = vunpack.c.l.b16 %v2414
    %v2447 = vunpack.c.l.b16 %v2415
    %v2448 = vunpack.c.l.b16 %v2416
    %v2449 = vunpack.c.l.b16 %v2417
    %v2450 = vunpack.c.l.b16 %v2418
    %v2451 = vunpack.c.l.b16 %v2419
    %v2452 = vunpack.c.l.b16 %v2420
    %v2453 = vunpack.c.l.b16 %v2421
    %v2454 = vunpack.c.l.b16 %v2422
    %v2455 = vpack.c.b16 %v2440, %v2439
    %v2456 = vpack.c.b16 %v2442, %v2441
    %v2457 = vpack.c.b16 %v2444, %v2443
    %v2458 = vpack.c.b16 %v2446, %v2445
    %v2459 = vpack.c.b16 %v2448, %v2447
    %v2460 = vpack.c.b16 %v2450, %v2449
    %v2461 = vpack.c.b16 %v2452, %v2451
    %v2462 = vpack.c.b16 %v2454, %v2453
    %2471 = vmatpush.bf16.msra.mxu0 %v2462
    %2472 = vmatpush.bf16.msra.mxu0 %v2461
    %2473 = vmatpush.bf16.msra.mxu0 %v2460
    %2474 = vmatpush.bf16.msra.mxu0 %v2459
    %2475 = vmatpush.bf16.msra.mxu0 %v2458
    %2476 = vmatpush.bf16.msra.mxu0 %v2457
    %2477 = vmatpush.bf16.msra.mxu0 %v2456
    %2478 = vmatpush.bf16.msra.mxu0 %v2455
    %2479 = vmatmul.bf16.gmra.mxu0 %v2399
    %v2480 = vpop.f32.mrf.mxu0
    %v2481 = vadd.f32 0.0, %v2480
    %v2482 = vpop.f32.mrf.mxu0
    %v2483 = vadd.f32 0.0, %v2482
    %2484 = vmatmul.bf16.gmra.mxu0 %v2400
    %v2485 = vpop.f32.mrf.mxu0
    %v2486 = vadd.f32 0.0, %v2485
    %v2487 = vpop.f32.mrf.mxu0
    %v2488 = vadd.f32 0.0, %v2487
    %2489 = vmatmul.bf16.gmra.mxu0 %v2401
    %v2490 = vpop.f32.mrf.mxu0
    %v2491 = vadd.f32 0.0, %v2490
    %v2492 = vpop.f32.mrf.mxu0
    %v2493 = vadd.f32 0.0, %v2492
    %2494 = vmatmul.bf16.gmra.mxu0 %v2402
    %v2495 = vpop.f32.mrf.mxu0
    %v2496 = vadd.f32 0.0, %v2495
    %v2497 = vpop.f32.mrf.mxu0
    %v2498 = vadd.f32 0.0, %v2497
    %2499 = vmatmul.bf16.gmra.mxu0 %v2403
    %v2500 = vpop.f32.mrf.mxu0
    %v2501 = vadd.f32 0.0, %v2500
    %v2502 = vpop.f32.mrf.mxu0
    %v2503 = vadd.f32 0.0, %v2502
    %2504 = vmatmul.bf16.gmra.mxu0 %v2404
    %v2505 = vpop.f32.mrf.mxu0
    %v2506 = vadd.f32 0.0, %v2505
    %v2507 = vpop.f32.mrf.mxu0
    %v2508 = vadd.f32 0.0, %v2507
    %2509 = vmatmul.bf16.gmra.mxu0 %v2405
    %v2510 = vpop.f32.mrf.mxu0
    %v2511 = vadd.f32 0.0, %v2510
    %v2512 = vpop.f32.mrf.mxu0
    %v2513 = vadd.f32 0.0, %v2512
    %2514 = vmatmul.bf16.gmra.mxu0 %v2406
    %v2515 = vpop.f32.mrf.mxu0
    %v2516 = vadd.f32 0.0, %v2515
    %v2517 = vpop.f32.mrf.mxu0
    %v2518 = vadd.f32 0.0, %v2517
    %2519 = vdwg.mxu0
    %v2520 = vld [vmem:[%s8] sm:$0x1]
    %v2521 = vld [vmem:[%s9] sm:$0x1]
    %v2522 = vadd.f32 %v2481, %v2483
    %v2523 = vadd.f32 %v2522, %v2486
    %v2524 = vadd.f32 %v2523, %v2488
    %v2525 = vadd.f32 %v2524, %v2491
    %v2526 = vadd.f32 %v2525, %v2493
    %v2527 = vadd.f32 %v2526, %v2496
    %v2528 = vadd.f32 %v2527, %v2498
    %v2529 = vadd.f32 %v2528, %v2501
    %v2530 = vadd.f32 %v2529, %v2503
    %v2531 = vadd.f32 %v2530, %v2506
    %v2532 = vadd.f32 %v2531, %v2508
    %v2533 = vadd.f32 %v2532, %v2511
    %v2534 = vadd.f32 %v2533, %v2513
    %v2535 = vadd.f32 %v2534, %v2516
    %v2536 = vadd.f32 %v2535, %v2518
    %v2537 = vrot.slane %v2536, 4
    %v2538 = vadd.f32 %v2536, %v2537
    %v2539 = vrot.slane %v2538, 2
    %v2540 = vadd.f32 %v2538, %v2539
    %v2541 = vrot.slane %v2540, 1
    %v2542 = vadd.f32 %v2540, %v2541
    %v2543 = vmul.f32 %v2542, 0.0078125
    %v2544 = vmul.f32 %v2481, %v2481
    %v2545 = vmul.f32 %v2483, %v2483
    %v2546 = vmul.f32 %v2486, %v2486
    %v2547 = vmul.f32 %v2488, %v2488
    %v2548 = vmul.f32 %v2491, %v2491
    %v2549 = vmul.f32 %v2493, %v2493
    %v2550 = vmul.f32 %v2496, %v2496
    %v2551 = vmul.f32 %v2498, %v2498
    %v2552 = vmul.f32 %v2501, %v2501
    %v2553 = vmul.f32 %v2503, %v2503
    %v2554 = vmul.f32 %v2506, %v2506
    %v2555 = vmul.f32 %v2508, %v2508
    %v2556 = vmul.f32 %v2511, %v2511
    %v2557 = vmul.f32 %v2513, %v2513
    %v2558 = vmul.f32 %v2516, %v2516
    %v2559 = vmul.f32 %v2518, %v2518
    %v2560 = vadd.f32 %v2544, %v2545
    %v2561 = vadd.f32 %v2560, %v2546
    %v2562 = vadd.f32 %v2561, %v2547
    %v2563 = vadd.f32 %v2562, %v2548
    %v2564 = vadd.f32 %v2563, %v2549
    %v2565 = vadd.f32 %v2564, %v2550
    %v2566 = vadd.f32 %v2565, %v2551
    %v2567 = vadd.f32 %v2566, %v2552
    %v2568 = vadd.f32 %v2567, %v2553
    %v2569 = vadd.f32 %v2568, %v2554
    %v2570 = vadd.f32 %v2569, %v2555
    %v2571 = vadd.f32 %v2570, %v2556
    %v2572 = vadd.f32 %v2571, %v2557
    %v2573 = vadd.f32 %v2572, %v2558
    %v2574 = vadd.f32 %v2573, %v2559
    %v2575 = vrot.slane %v2574, 4
    %v2576 = vadd.f32 %v2574, %v2575
    %v2577 = vrot.slane %v2576, 2
    %v2578 = vadd.f32 %v2576, %v2577
    %v2579 = vrot.slane %v2578, 1
    %v2580 = vadd.f32 %v2578, %v2579
    %v2581 = vmul.f32 %v2580, 0.0078125
    %v2582 = vmul.f32 %v2543, %v2543
    %v2583 = vsub.f32 %v2581, %v2582
    %v2584 = vadd.f32 %v2583, 1e-05
    %v2585 = vrsqrt.pop %v2584
    %v2586 = vmul.f32 %v2585, %v2584
    %v2587 = vmul.f32 %v2586, %v2585
    %v2588 = vmul.f32 0.5, %v2587
    %v2589 = vsub.f32 1.5, %v2588
    %v2590 = vmul.f32 %v2585, %v2589
    %vm2591 = vweird.f32 %v2584
    %vm2592 = vweird.f32 %v2585
    %vm2593 = vmor %vm2591, %vm2592
    %v2594 = vsel %vm2593, %v2585, %v2590
    %v2595 = vmul.f32 %v2520, %v2594
    %v2597 = vperm.slane %v2595, 0
    %v2599 = vmul.f32 %v2481, %v2597
    %v2600 = vmul.f32 %v2483, %v2597
    %v2601 = vmul.f32 %v2486, %v2597
    %v2602 = vmul.f32 %v2488, %v2597
    %v2603 = vmul.f32 %v2491, %v2597
    %v2604 = vmul.f32 %v2493, %v2597
    %v2605 = vmul.f32 %v2496, %v2597
    %v2606 = vmul.f32 %v2498, %v2597
    %v2607 = vmul.f32 %v2501, %v2597
    %v2608 = vmul.f32 %v2503, %v2597
    %v2609 = vmul.f32 %v2506, %v2597
    %v2610 = vmul.f32 %v2508, %v2597
    %v2611 = vmul.f32 %v2511, %v2597
    %v2612 = vmul.f32 %v2513, %v2597
    %v2613 = vmul.f32 %v2516, %v2597
    %v2614 = vmul.f32 %v2518, %v2597
    %v2615 = vmul.f32 %v2543, %v2595
    %v2616 = vsub.f32 %v2521, %v2615
    %v2618 = vperm.slane %v2616, 0
    %v2620 = vadd.f32 %v2599, %v2618
    %v2621 = vadd.f32 %v2600, %v2618
    %v2622 = vadd.f32 %v2601, %v2618
    %v2623 = vadd.f32 %v2602, %v2618
    %v2624 = vadd.f32 %v2603, %v2618
    %v2625 = vadd.f32 %v2604, %v2618
    %v2626 = vadd.f32 %v2605, %v2618
    %v2627 = vadd.f32 %v2606, %v2618
    %v2628 = vadd.f32 %v2607, %v2618
    %v2629 = vadd.f32 %v2608, %v2618
    %v2630 = vadd.f32 %v2609, %v2618
    %v2631 = vadd.f32 %v2610, %v2618
    %v2632 = vadd.f32 %v2611, %v2618
    %v2633 = vadd.f32 %v2612, %v2618
    %v2634 = vadd.f32 %v2613, %v2618
    %v2635 = vadd.f32 %v2614, %v2618
    %v2636 = vadd.f32 %v2620, %v2621
    %v2637 = vadd.f32 %v2636, %v2622
    %v2638 = vadd.f32 %v2637, %v2623
    %v2639 = vadd.f32 %v2638, %v2624
    %v2640 = vadd.f32 %v2639, %v2625
    %v2641 = vadd.f32 %v2640, %v2626
    %v2642 = vadd.f32 %v2641, %v2627
    %v2643 = vrot.slane %v2642, 4
    %v2644 = vadd.f32 %v2642, %v2643
    %v2645 = vrot.slane %v2644, 2
    %v2646 = vadd.f32 %v2644, %v2645
    %v2647 = vrot.slane %v2646, 1
    %v2648 = vadd.f32 %v2646, %v2647
    %v2649 = vadd.f32 %v2628, %v2629
    %v2650 = vadd.f32 %v2649, %v2630
    %v2651 = vadd.f32 %v2650, %v2631
    %v2652 = vadd.f32 %v2651, %v2632
    %v2653 = vadd.f32 %v2652, %v2633
    %v2654 = vadd.f32 %v2653, %v2634
    %v2655 = vadd.f32 %v2654, %v2635
    %v2656 = vrot.slane %v2655, 4
    %v2657 = vadd.f32 %v2655, %v2656
    %v2658 = vrot.slane %v2657, 2
    %v2659 = vadd.f32 %v2657, %v2658
    %v2660 = vrot.slane %v2659, 1
    %v2661 = vadd.f32 %v2659, %v2660
    %v2662 = vrcp.pop 64.0
    %v2663 = vmul.f32 64.0, %v2662
    %v2664 = vsub.f32 1.0, %v2663
    %v2665 = vmul.f32 %v2662, %v2664
    %v2666 = vadd.f32 %v2662, %v2665
    %vm2667 = vweird.f32 %v2662
    %v2668 = vsel %vm2667, %v2662, %v2666
    %v2669 = vmul.f32 %v2648, %v2668
    %v2670 = vmul.f32 %v2661, %v2668
    %v2671 = vpack.c.bf16 %v2669, %v2669
    %v2672 = vpack.c.bf16 %v2670, %v2670
    %v2673 = vld [vmem:[#allocation11] sm:$0xf]
    %v2674 = vld [vmem:[#allocation11 + $0x4] sm:$0xf]
    %v2675 = vld [vmem:[#allocation11 + $0x8] sm:$0xf]
    %v2676 = vld [vmem:[#allocation11 + $0xc] sm:$0xf]
    %v2677 = vld [vmem:[#allocation11 + $0x10] sm:$0xf]
    %v2678 = vld [vmem:[#allocation11 + $0x14] sm:$0xf]
    %v2679 = vld [vmem:[#allocation11 + $0x18] sm:$0xf]
    %v2680 = vld [vmem:[#allocation11 + $0x1c] sm:$0xf]
    %v2681 = vld [vmem:[#allocation11 + $0x20] sm:$0xf]
    %v2682 = vld [vmem:[#allocation11 + $0x24] sm:$0xf]
    %v2683 = vld [vmem:[#allocation11 + $0x28] sm:$0xf]
    %v2684 = vld [vmem:[#allocation11 + $0x2c] sm:$0xf]
    %v2685 = vld [vmem:[#allocation11 + $0x30] sm:$0xf]
    %v2686 = vld [vmem:[#allocation11 + $0x34] sm:$0xf]
    %v2687 = vld [vmem:[#allocation11 + $0x38] sm:$0xf]
    %v2688 = vld [vmem:[#allocation11 + $0x3c] sm:$0xf]
    %v2689 = vld [vmem:[%s11] sm:$0x1]
    %v2691 = vperm.slane %v2689, 0
    %v2695 = vunpack.c.l.b16 %v2671
    %v2696 = vunpack.c.l.b16 %v2672
    %vm2697 = vcmask 1041409
    %v2698 = vsel %vm2697, %v2696, %v2695
    %v2699 = vpack.c.b16 %v2698, %v2698
    %v2717 = vunpack.c.l.b16 %v2673
    %v2718 = vunpack.c.l.b16 %v2674
    %v2719 = vunpack.c.l.b16 %v2675
    %v2720 = vunpack.c.l.b16 %v2676
    %v2721 = vunpack.c.l.b16 %v2677
    %v2722 = vunpack.c.l.b16 %v2678
    %v2723 = vunpack.c.l.b16 %v2679
    %v2724 = vunpack.c.l.b16 %v2680
    %v2725 = vunpack.c.l.b16 %v2681
    %v2726 = vunpack.c.l.b16 %v2682
    %v2727 = vunpack.c.l.b16 %v2683
    %v2728 = vunpack.c.l.b16 %v2684
    %v2729 = vunpack.c.l.b16 %v2685
    %v2730 = vunpack.c.l.b16 %v2686
    %v2731 = vunpack.c.l.b16 %v2687
    %v2732 = vunpack.c.l.b16 %v2688
    %v2733 = vpack.c.b16 %v2718, %v2717
    %v2734 = vpack.c.b16 %v2720, %v2719
    %v2735 = vpack.c.b16 %v2722, %v2721
    %v2736 = vpack.c.b16 %v2724, %v2723
    %v2737 = vpack.c.b16 %v2726, %v2725
    %v2738 = vpack.c.b16 %v2728, %v2727
    %v2739 = vpack.c.b16 %v2730, %v2729
    %v2740 = vpack.c.b16 %v2732, %v2731
    %2749 = vmatpush.bf16.msra.mxu0 %v2740
    %2750 = vmatpush.bf16.msra.mxu0 %v2739
    %2751 = vmatpush.bf16.msra.mxu0 %v2738
    %2752 = vmatpush.bf16.msra.mxu0 %v2737
    %2753 = vmatpush.bf16.msra.mxu0 %v2736
    %2754 = vmatpush.bf16.msra.mxu0 %v2735
    %2755 = vmatpush.bf16.msra.mxu0 %v2734
    %2756 = vmatpush.bf16.msra.mxu0 %v2733
    %2757 = vmatmul.bf16.gmra.mxu0 %v2699
    %v2758 = vpop.f32.mrf.mxu0
    %v2759 = vadd.f32 %v2691, %v2758
    %v2760 = vpop.f32.mrf.mxu0
    %2761 = vdwg.mxu0
    %v2762 = vmax.f32 %v2759, 0.0
    %v2763 = vpack.c.bf16 %v2762, %v2762
    %v2764 = vld [vmem:[#allocation12] sm:$0xf]
    %v2765 = vld [vmem:[#allocation12 + $0x4] sm:$0xf]
    %v2766 = vld [vmem:[#allocation12 + $0x8] sm:$0xf]
    %v2767 = vld [vmem:[#allocation12 + $0xc] sm:$0xf]
    %v2768 = vld [vmem:[#allocation12 + $0x10] sm:$0xf]
    %v2769 = vld [vmem:[#allocation12 + $0x14] sm:$0xf]
    %v2770 = vld [vmem:[#allocation12 + $0x18] sm:$0xf]
    %v2771 = vld [vmem:[#allocation12 + $0x1c] sm:$0xf]
    %v2772 = vld [vmem:[#allocation12 + $0x20] sm:$0xf]
    %v2773 = vld [vmem:[#allocation12 + $0x24] sm:$0xf]
    %v2774 = vld [vmem:[#allocation12 + $0x28] sm:$0xf]
    %v2775 = vld [vmem:[#allocation12 + $0x2c] sm:$0xf]
    %v2776 = vld [vmem:[#allocation12 + $0x30] sm:$0xf]
    %v2777 = vld [vmem:[#allocation12 + $0x34] sm:$0xf]
    %v2778 = vld [vmem:[#allocation12 + $0x38] sm:$0xf]
    %v2779 = vld [vmem:[#allocation12 + $0x3c] sm:$0xf]
    %v2780 = vld [vmem:[%s13] sm:$0x1]
    %v2782 = vperm.slane %v2780, 0
    %v2800 = vunpack.c.l.b16 %v2764
    %v2801 = vunpack.c.l.b16 %v2765
    %v2802 = vunpack.c.l.b16 %v2766
    %v2803 = vunpack.c.l.b16 %v2767
    %v2804 = vunpack.c.l.b16 %v2768
    %v2805 = vunpack.c.l.b16 %v2769
    %v2806 = vunpack.c.l.b16 %v2770
    %v2807 = vunpack.c.l.b16 %v2771
    %v2808 = vunpack.c.l.b16 %v2772
    %v2809 = vunpack.c.l.b16 %v2773
    %v2810 = vunpack.c.l.b16 %v2774
    %v2811 = vunpack.c.l.b16 %v2775
    %v2812 = vunpack.c.l.b16 %v2776
    %v2813 = vunpack.c.l.b16 %v2777
    %v2814 = vunpack.c.l.b16 %v2778
    %v2815 = vunpack.c.l.b16 %v2779
    %v2816 = vpack.c.b16 %v2801, %v2800
    %v2817 = vpack.c.b16 %v2803, %v2802
    %v2818 = vpack.c.b16 %v2805, %v2804
    %v2819 = vpack.c.b16 %v2807, %v2806
    %v2820 = vpack.c.b16 %v2809, %v2808
    %v2821 = vpack.c.b16 %v2811, %v2810
    %v2822 = vpack.c.b16 %v2813, %v2812
    %v2823 = vpack.c.b16 %v2815, %v2814
    %2832 = vmatpush.bf16.msra.mxu0 %v2823
    %2833 = vmatpush.bf16.msra.mxu0 %v2822
    %2834 = vmatpush.bf16.msra.mxu0 %v2821
    %2835 = vmatpush.bf16.msra.mxu0 %v2820
    %2836 = vmatpush.bf16.msra.mxu0 %v2819
    %2837 = vmatpush.bf16.msra.mxu0 %v2818
    %2838 = vmatpush.bf16.msra.mxu0 %v2817
    %2839 = vmatpush.bf16.msra.mxu0 %v2816
    %2840 = vmatmul.bf16.gmra.mxu0 %v2763
    %v2841 = vpop.f32.mrf.mxu0
    %v2842 = vadd.f32 %v2782, %v2841
    %v2843 = vpop.f32.mrf.mxu0
    %2844 = vdwg.mxu0
    %v2845 = vxor.u32 %v2842, 2147483648
    %v2846 = vmul.f32 %v2845, 1.442695
    %v2847 = vpow.pop %v2846
    %v2848 = vadd.f32 %v2847, 1.0
    %v2849 = vrcp.pop %v2848
    %v2850 = vmul.f32 %v2848, %v2849
    %v2851 = vsub.f32 1.0, %v2850
    %v2852 = vmul.f32 %v2849, %v2851
    %v2853 = vadd.f32 %v2849, %v2852
    %vm2854 = vweird.f32 %v2848
    %vm2855 = vweird.f32 %v2849
    %vm2856 = vmor %vm2854, %vm2855
    %v2857 = vsel %vm2856, %v2849, %v2853
    %v2858 = vand.u32 2147483647, %v2848
    %vm2859 = vcmp.eq.f32.partialorder %v2858, 8.507059e+37
    %v2860 = vand.u32 %v2848, 2147483648
    %v2861 = vor.u32 1.1754944e-38, %v2860
    %v2862 = vsel %vm2859, %v2861, %v2857
    %v2863 = vmul.f32 1.0, %v2862
    %v2864 = vld [vmem:[#allocation14] sm:$0xf]
    %v2865 = vld [vmem:[#allocation14 + $0x4] sm:$0xf]
    %v2866 = vld [vmem:[#allocation14 + $0x8] sm:$0xf]
    %v2867 = vld [vmem:[#allocation14 + $0xc] sm:$0xf]
    %v2868 = vld [vmem:[#allocation14 + $0x10] sm:$0xf]
    %v2869 = vld [vmem:[#allocation14 + $0x14] sm:$0xf]
    %v2870 = vld [vmem:[#allocation14 + $0x18] sm:$0xf]
    %v2871 = vld [vmem:[#allocation14 + $0x1c] sm:$0xf]
    %v2872 = vld [vmem:[#allocation14 + $0x20] sm:$0xf]
    %v2873 = vld [vmem:[#allocation14 + $0x24] sm:$0xf]
    %v2874 = vld [vmem:[#allocation14 + $0x28] sm:$0xf]
    %v2875 = vld [vmem:[#allocation14 + $0x2c] sm:$0xf]
    %v2876 = vld [vmem:[#allocation14 + $0x30] sm:$0xf]
    %v2877 = vld [vmem:[#allocation14 + $0x34] sm:$0xf]
    %v2878 = vld [vmem:[#allocation14 + $0x38] sm:$0xf]
    %v2879 = vld [vmem:[#allocation14 + $0x3c] sm:$0xf]
    %v2880 = vld [vmem:[%s15] sm:$0x1]
    %v2882 = vperm.slane %v2880, 0
    %v2900 = vunpack.c.l.b16 %v2864
    %v2901 = vunpack.c.l.b16 %v2865
    %v2902 = vunpack.c.l.b16 %v2866
    %v2903 = vunpack.c.l.b16 %v2867
    %v2904 = vunpack.c.l.b16 %v2868
    %v2905 = vunpack.c.l.b16 %v2869
    %v2906 = vunpack.c.l.b16 %v2870
    %v2907 = vunpack.c.l.b16 %v2871
    %v2908 = vunpack.c.l.b16 %v2872
    %v2909 = vunpack.c.l.b16 %v2873
    %v2910 = vunpack.c.l.b16 %v2874
    %v2911 = vunpack.c.l.b16 %v2875
    %v2912 = vunpack.c.l.b16 %v2876
    %v2913 = vunpack.c.l.b16 %v2877
    %v2914 = vunpack.c.l.b16 %v2878
    %v2915 = vunpack.c.l.b16 %v2879
    %v2916 = vpack.c.b16 %v2901, %v2900
    %v2917 = vpack.c.b16 %v2903, %v2902
    %v2918 = vpack.c.b16 %v2905, %v2904
    %v2919 = vpack.c.b16 %v2907, %v2906
    %v2920 = vpack.c.b16 %v2909, %v2908
    %v2921 = vpack.c.b16 %v2911, %v2910
    %v2922 = vpack.c.b16 %v2913, %v2912
    %v2923 = vpack.c.b16 %v2915, %v2914
    %2932 = vmatpush.bf16.msra.mxu0 %v2923
    %2933 = vmatpush.bf16.msra.mxu0 %v2922
    %2934 = vmatpush.bf16.msra.mxu0 %v2921
    %2935 = vmatpush.bf16.msra.mxu0 %v2920
    %2936 = vmatpush.bf16.msra.mxu0 %v2919
    %2937 = vmatpush.bf16.msra.mxu0 %v2918
    %2938 = vmatpush.bf16.msra.mxu0 %v2917
    %2939 = vmatpush.bf16.msra.mxu0 %v2916
    %2940 = vmatmul.bf16.gmra.mxu0 %v227
    %v2941 = vpop.f32.mrf.mxu0
    %v2942 = vadd.f32 %v2882, %v2941
    %v2943 = vpop.f32.mrf.mxu0
    %v2944 = vadd.f32 %v2882, %v2943
    %2945 = vmatmul.bf16.gmra.mxu0 %v228
    %v2946 = vpop.f32.mrf.mxu0
    %v2947 = vadd.f32 %v2882, %v2946
    %v2948 = vpop.f32.mrf.mxu0
    %v2949 = vadd.f32 %v2882, %v2948
    %2950 = vmatmul.bf16.gmra.mxu0 %v229
    %v2951 = vpop.f32.mrf.mxu0
    %v2952 = vadd.f32 %v2882, %v2951
    %v2953 = vpop.f32.mrf.mxu0
    %v2954 = vadd.f32 %v2882, %v2953
    %2955 = vmatmul.bf16.gmra.mxu0 %v230
    %v2956 = vpop.f32.mrf.mxu0
    %v2957 = vadd.f32 %v2882, %v2956
    %v2958 = vpop.f32.mrf.mxu0
    %v2959 = vadd.f32 %v2882, %v2958
    %2960 = vmatmul.bf16.gmra.mxu0 %v231
    %v2961 = vpop.f32.mrf.mxu0
    %v2962 = vadd.f32 %v2882, %v2961
    %v2963 = vpop.f32.mrf.mxu0
    %v2964 = vadd.f32 %v2882, %v2963
    %2965 = vmatmul.bf16.gmra.mxu0 %v232
    %v2966 = vpop.f32.mrf.mxu0
    %v2967 = vadd.f32 %v2882, %v2966
    %v2968 = vpop.f32.mrf.mxu0
    %v2969 = vadd.f32 %v2882, %v2968
    %2970 = vmatmul.bf16.gmra.mxu0 %v233
    %v2971 = vpop.f32.mrf.mxu0
    %v2972 = vadd.f32 %v2882, %v2971
    %v2973 = vpop.f32.mrf.mxu0
    %v2974 = vadd.f32 %v2882, %v2973
    %2975 = vmatmul.bf16.gmra.mxu0 %v234
    %v2976 = vpop.f32.mrf.mxu0
    %v2977 = vadd.f32 %v2882, %v2976
    %v2978 = vpop.f32.mrf.mxu0
    %v2979 = vadd.f32 %v2882, %v2978
    %2980 = vdwg.mxu0
    %v2982 = vrot.slane %v2863, 1
    %v2983 = vperm.slane %v2863, 0
    %v2984 = vperm.slane %v2982, 0
    %v2987 = vmul.f32 %v2620, %v2983
    %v2988 = vmul.f32 %v2621, %v2983
    %v2989 = vmul.f32 %v2622, %v2983
    %v2990 = vmul.f32 %v2623, %v2983
    %v2991 = vmul.f32 %v2624, %v2983
    %v2992 = vmul.f32 %v2625, %v2983
    %v2993 = vmul.f32 %v2626, %v2983
    %v2994 = vmul.f32 %v2627, %v2983
    %v2995 = vmul.f32 %v2628, %v2984
    %v2996 = vmul.f32 %v2629, %v2984
    %v2997 = vmul.f32 %v2630, %v2984
    %v2998 = vmul.f32 %v2631, %v2984
    %v2999 = vmul.f32 %v2632, %v2984
    %v3000 = vmul.f32 %v2633, %v2984
    %v3001 = vmul.f32 %v2634, %v2984
    %v3002 = vmul.f32 %v2635, %v2984
    %v3003 = vadd.f32 %v2987, %v2942
    %v3004 = vadd.f32 %v2988, %v2944
    %v3005 = vadd.f32 %v2989, %v2947
    %v3006 = vadd.f32 %v2990, %v2949
    %v3007 = vadd.f32 %v2991, %v2952
    %v3008 = vadd.f32 %v2992, %v2954
    %v3009 = vadd.f32 %v2993, %v2957
    %v3010 = vadd.f32 %v2994, %v2959
    %v3011 = vadd.f32 %v2995, %v2962
    %v3012 = vadd.f32 %v2996, %v2964
    %v3013 = vadd.f32 %v2997, %v2967
    %v3014 = vadd.f32 %v2998, %v2969
    %v3015 = vadd.f32 %v2999, %v2972
    %v3016 = vadd.f32 %v3000, %v2974
    %v3017 = vadd.f32 %v3001, %v2977
    %v3018 = vadd.f32 %v3002, %v2979
    %v3019 = vmax.f32 %v3003, 0.0
    %v3020 = vmax.f32 %v3004, 0.0
    %v3021 = vmax.f32 %v3005, 0.0
    %v3022 = vmax.f32 %v3006, 0.0
    %v3023 = vmax.f32 %v3007, 0.0
    %v3024 = vmax.f32 %v3008, 0.0
    %v3025 = vmax.f32 %v3009, 0.0
    %v3026 = vmax.f32 %v3010, 0.0
    %v3027 = vmax.f32 %v3011, 0.0
    %v3028 = vmax.f32 %v3012, 0.0
    %v3029 = vmax.f32 %v3013, 0.0
    %v3030 = vmax.f32 %v3014, 0.0
    %v3031 = vmax.f32 %v3015, 0.0
    %v3032 = vmax.f32 %v3016, 0.0
    %v3033 = vmax.f32 %v3017, 0.0
    %v3034 = vmax.f32 %v3018, 0.0
    %3035 = vst [vmem:[#allocation15] sm:$0xff] %v3019
    %3036 = vst [vmem:[#allocation15 + $0x8] sm:$0xff] %v3020
    %3037 = vst [vmem:[#allocation15 + $0x10] sm:$0xff] %v3021
    %3038 = vst [vmem:[#allocation15 + $0x18] sm:$0xff] %v3022
    %3039 = vst [vmem:[#allocation15 + $0x20] sm:$0xff] %v3023
    %3040 = vst [vmem:[#allocation15 + $0x28] sm:$0xff] %v3024
    %3041 = vst [vmem:[#allocation15 + $0x30] sm:$0xff] %v3025
    %3042 = vst [vmem:[#allocation15 + $0x38] sm:$0xff] %v3026
    %3043 = vst [vmem:[#allocation15 + $0x40] sm:$0xff] %v3027
    %3044 = vst [vmem:[#allocation15 + $0x48] sm:$0xff] %v3028
    %3045 = vst [vmem:[#allocation15 + $0x50] sm:$0xff] %v3029
    %3046 = vst [vmem:[#allocation15 + $0x58] sm:$0xff] %v3030
    %3047 = vst [vmem:[#allocation15 + $0x60] sm:$0xff] %v3031
    %3048 = vst [vmem:[#allocation15 + $0x68] sm:$0xff] %v3032
    %3049 = vst [vmem:[#allocation15 + $0x70] sm:$0xff] %v3033
    %3050 = vst [vmem:[#allocation15 + $0x78] sm:$0xff] %v3034
    // Predicated region
    $region94: #{tpu_custom_call.1} parent=1 // pred_check
      _
    $region95: #{tpu_custom_call.1} parent=1 // pred_check_branch
      %3052 = sbr.rel (0) target = $region97
    $region96: #{tpu_custom_call.1} parent=1 // pred_region
      %3054 = vsyncadd [#allocation5], 0
      %s3055 = sshll.u32 [#allocation15], 4
      %s3056 = int_to_ptr.vmem [resolvable:$true] %s3055
      %s3057 = sshll.u32 %s16, 4
      %s3058 = int_to_ptr.hbm [resolvable:$true] %s3057
      %3063 = dma.vmem_to_hbm [thread:$0]  %s3056, 2048, %s3058, [#allocation5], 128, 128, 8
    $region97: #{tpu_custom_call.1} parent=1 // pred_fallthru
      _
    // Predicated region
    $region98: #{tpu_custom_call.1} parent=1 // pred_check
      _
    $region99: #{tpu_custom_call.1} parent=1 // pred_check_branch
      %3065 = sbr.rel (0) target = $region101
    $region100: #{tpu_custom_call.1} parent=1 // pred_region
      %3067 = dma.done [#allocation5], 2048
    $region101: #{tpu_custom_call.1} parent=1 // pred_fallthru
      _
    %3068 = vsyncpa [#allocation4], 1
    %3069 = vsyncpa [#allocation7], 1
    %3070 = vsyncpa [#allocation10], 1
    %3071 = vsyncpa [#allocation13], 1
    %3072 = vsyncpa [#allocation5], 1

</llo_original>
